<compile_context>
chip_gen: v7x
topology: tpu7x:2x2x1
jax: 0.10.0
libtpu: 0.0.40
codegen_flags: <defaults>
</compile_context>

<pallas_src>
import functools

import jax
import jax.numpy as jnp
from jax.experimental import pallas as pl
from jax.experimental.pallas import tpu as pltpu

# ----------------------------------------------------------------------------
# Static problem sizes (match the wrapped model)
# ----------------------------------------------------------------------------
C_IN, C1, C2 = 4, 8, 16
H = W = 16
HP = WP = H + 2                 # padded spatial extent (pad=1)
SP = HP * WP                    # 324 real padded positions per sample
SP_C = 384                      # compute / store width: 3 x 128 lanes (lane dense)
GUARD = 128                     # lane-tile-aligned guard for shifted tap slices
WG2 = GUARD + SP_C + GUARD      # 640 guarded flat width
N_CLS = 10
# flat-index offset of each 3x3 tap: (di-1)*WP + (dj-1)
TAP_OFFS = tuple((di - 1) * WP + (dj - 1) for di in range(3) for dj in range(3))
MAX_OFF = max(abs(o) for o in TAP_OFFS)       # 19

# Static bounds: every tap slice [GUARD+off, GUARD+off+SP_C) must stay inside the
# guarded width -- VMEM refs have NO runtime bounds checking.
assert GUARD >= MAX_OFF
assert GUARD + MAX_OFF + SP_C <= WG2
assert SP_C >= SP and SP_C % 128 == 0 and GUARD % 128 == 0


# ----------------------------------------------------------------------------
# Fused forward kernel: one grid step == TB samples
# ----------------------------------------------------------------------------
def _fused_forward_kernel(tb, x_ref, mask_ref, w1_ref, b1_ref, w2_ref, b2_ref,
                          w3_ref, b3_ref, h1_ref, h2_ref, logits_ref, h1g):
    # Zero only the guard columns of the persistent scratch (interior is fully
    # overwritten every sample).  Done every grid step (not program_id==0) so it
    # stays correct when the "parallel" batch axis is sharded across cores.
    zg = jnp.zeros((C1, GUARD), jnp.float32)
    h1g[:, :GUARD] = zg
    h1g[:, GUARD + SP_C:] = zg

    mask = mask_ref[...]            # [1, SP_C] {0,1}: interior of the 18x18 pad
    w1 = w1_ref[...]                # [C1, 9*C_IN]
    b1 = b1_ref[...]                # [C1, 1]
    w2 = w2_ref[...]                # [C2, 9*C1]
    b2 = b2_ref[...]                # [C2, 1]
    b3 = b3_ref[...]                # [1, N_CLS]

    for b in range(tb):             # static unroll over the batch tile
        xb = x_ref[b]               # [C_IN, WG2]

        # ---- conv1 + bias + ReLU : ONE GEMM over the im2col block (K=36) ----
        col1 = jnp.concatenate(
            [xb[:, GUARD + o:GUARD + o + SP_C] for o in TAP_OFFS], axis=0)
        y1 = jnp.dot(w1, col1, preferred_element_type=jnp.float32) + b1
        y1 = jnp.maximum(y1, 0.0) * mask          # zero the padded ring + tail
        h1_ref[b] = y1                            # lane-dense [C1, 384] store

        # ---- conv2 + bias + ReLU : re-guard h1, ONE GEMM (K=72) ----
        h1g[:, GUARD:GUARD + SP_C] = y1           # lane-tile-aligned store
        col2 = jnp.concatenate(
            [h1g[:, GUARD + o:GUARD + o + SP_C] for o in TAP_OFFS], axis=0)
        y2 = jnp.dot(w2, col2, preferred_element_type=jnp.float32) + b2
        y2 = jnp.maximum(y2, 0.0)                 # no ring mask: ring sliced off
        h2_ref[b] = y2                            # in wrapper & fc_w is 0 there

        # ---- FC : per-class contraction against fc-weight REF slices ----
        # (avoids materializing the [N_CLS, C2, SP_C] product -> no vreg spills)
        parts = [jnp.sum(w3_ref[n] * y2, keepdims=True) for n in range(N_CLS)]
        logits_ref[b] = jnp.concatenate(parts, axis=1) + b3


# ----------------------------------------------------------------------------
# Wrapper: layout prep (tiny plain-JAX glue) + single pallas_call
# ----------------------------------------------------------------------------
def relu_extractor_forward(x, params, names=False):
    """x: [B, 4, 16, 16] NCHW -> (logits [B,10], [relu1, relu2] activations)."""
    B = x.shape[0]
    TB = min(B, 8)                       # samples per grid step (batch blocking)
    nb = pl.cdiv(B, TB)
    B_pad = nb * TB

    # input -> channel-major guarded padded-flat layout [B_pad, C_IN, WG2]
    xp = jnp.pad(x, ((0, B_pad - B), (0, 0), (1, 1), (1, 1)))
    xp = xp.reshape(B_pad, C_IN, SP)
    x_g = jnp.pad(xp, ((0, 0), (0, 0), (GUARD, WG2 - GUARD - SP)))

    # {0,1} interior mask over the SP_C compute positions
    mask = jnp.zeros((HP, WP), jnp.float32).at[1:-1, 1:-1].set(1.0).reshape(1, SP)
    mask = jnp.pad(mask, ((0, 0), (0, SP_C - SP)))

    # conv weights -> [OC, tap*IC] so each tap is a contiguous im2col row block
    w1 = params["conv1_w"].transpose(0, 2, 3, 1).reshape(C1, 9 * C_IN)
    b1 = params["conv1_b"].reshape(C1, 1)
    w2 = params["conv2_w"].transpose(0, 2, 3, 1).reshape(C2, 9 * C1)
    b2 = params["conv2_b"].reshape(C2, 1)

    # fc weight [4096, 10] -> [10, C2, SP_C], zero at the pad ring & lane tail
    w3 = params["fc_w"].T.reshape(N_CLS, C2, H, W)
    w3 = jnp.pad(w3, ((0, 0), (0, 0), (1, 1), (1, 1))).reshape(N_CLS, C2, SP)
    w3 = jnp.pad(w3, ((0, 0), (0, 0), (0, SP_C - SP)))
    b3 = params["fc_b"].reshape(1, N_CLS)

    out_shapes = (
        jax.ShapeDtypeStruct((B_pad, C1, SP_C), jnp.float32),   # h1 (padded flat)
        jax.ShapeDtypeStruct((B_pad, C2, SP_C), jnp.float32),   # h2 (padded flat)
        jax.ShapeDtypeStruct((B_pad, 1, N_CLS), jnp.float32),   # logits
    )
    grid_spec = pltpu.PrefetchScalarGridSpec(
        num_scalar_prefetch=0,
        grid=(nb,),
        in_specs=[
            pl.BlockSpec((TB, C_IN, WG2), lambda i: (i, 0, 0)),     # x batch tile
            pl.BlockSpec((1, SP_C), lambda i: (0, 0)),              # interior mask
            pl.BlockSpec((C1, 9 * C_IN), lambda i: (0, 0)),         # conv1 w
            pl.BlockSpec((C1, 1), lambda i: (0, 0)),                # conv1 b
            pl.BlockSpec((C2, 9 * C1), lambda i: (0, 0)),           # conv2 w
            pl.BlockSpec((C2, 1), lambda i: (0, 0)),                # conv2 b
            pl.BlockSpec((N_CLS, C2, SP_C), lambda i: (0, 0, 0)),   # fc w
            pl.BlockSpec((1, N_CLS), lambda i: (0, 0)),             # fc b
        ],
        out_specs=[
            pl.BlockSpec((TB, C1, SP_C), lambda i: (i, 0, 0)),
            pl.BlockSpec((TB, C2, SP_C), lambda i: (i, 0, 0)),
            pl.BlockSpec((TB, 1, N_CLS), lambda i: (i, 0, 0)),
        ],
        scratch_shapes=[pltpu.VMEM((C1, WG2), jnp.float32)],        # guarded h1
    )
    h1_flat, h2_flat, logits3 = pl.pallas_call(
        functools.partial(_fused_forward_kernel, TB),
        out_shape=out_shapes,
        grid_spec=grid_spec,
        compiler_params=pltpu.CompilerParams(
            dimension_semantics=("parallel",)),     # batch tiles -> v7x 2 TCs
    )(x_g, mask, w1, b1, w2, b2, w3, b3)

    # padded-flat -> NCHW is a slice + reshape (no wrapper transpose)
    h1 = h1_flat[:B, :, :SP].reshape(B, C1, HP, WP)[:, :, 1:-1, 1:-1]
    h2 = h2_flat[:B, :, :SP].reshape(B, C2, HP, WP)[:, :, 1:-1, 1:-1]
    output = logits3[:B, 0, :]

    activations = [h1, h2]                      # hook-collected ReLU outputs
    hook_names = ["model.relu1", "model.relu2"]
    if names:
        return output, activations, hook_names
    return output, activations


# ----------------------------------------------------------------------------
# Parameter init (deterministic, PyTorch-default-style uniform bounds)
# ----------------------------------------------------------------------------
def init_params(key):
    def u(k, shape, fan_in):
        bound = 1.0 / jnp.sqrt(jnp.float32(fan_in))
        return jax.random.uniform(k, shape, jnp.float32, -bound, bound)

    ks = jax.random.split(key, 6)
    return {
        "conv1_w": u(ks[0], (C1, C_IN, 3, 3), C_IN * 9),
        "conv1_b": u(ks[1], (C1,), C_IN * 9),
        "conv2_w": u(ks[2], (C2, C1, 3, 3), C1 * 9),
        "conv2_b": u(ks[3], (C2,), C1 * 9),
        "fc_w":    u(ks[4], (C2 * H * W, N_CLS), C2 * H * W),
        "fc_b":    u(ks[5], (N_CLS,), C2 * H * W),
    }


# ----------------------------------------------------------------------------
# Pure-JAX reference (sanity check of the Pallas path)
# ----------------------------------------------------------------------------
def _reference_forward(x, params):
    dn = ("NCHW", "OIHW", "NCHW")
    h1 = jax.lax.conv_general_dilated(x, params["conv1_w"], (1, 1), "SAME",
                                      dimension_numbers=dn)
    h1 = jnp.maximum(h1 + params["conv1_b"][None, :, None, None], 0.0)
    h2 = jax.lax.conv_general_dilated(h1, params["conv2_w"], (1, 1), "SAME",
                                      dimension_numbers=dn)
    h2 = jnp.maximum(h2 + params["conv2_b"][None, :, None, None], 0.0)
    out = h2.reshape(h2.shape[0], -1) @ params["fc_w"] + params["fc_b"]
    return out, [h1, h2]


if __name__ == "__main__":
    key = jax.random.PRNGKey(0)
    k_x, k_p = jax.random.split(key)

    x = jax.random.normal(k_x, (2, 4, 16, 16), jnp.float32)   # NCHW input
    params = init_params(k_p)

    output, acts, hook_names = relu_extractor_forward(x, params, names=True)
    jax.block_until_ready((output, acts))

    ref_out, ref_acts = _reference_forward(x, params)
    assert output.shape == (2, 10)
    assert acts[0].shape == (2, 8, 16, 16) and acts[1].shape == (2, 16, 16, 16)
    assert jnp.allclose(output, ref_out, atol=1e-3, rtol=1e-3)
    assert jnp.allclose(acts[0], ref_acts[0], atol=1e-3, rtol=1e-3)
    assert jnp.allclose(acts[1], ref_acts[1], atol=1e-3, rtol=1e-3)

    print("KERNEL_OK")
</pallas_src>

<mosaic_0001>
module attributes {stable_mosaic.version = 11 : i64} {
  func.func @_fused_forward_kernel(%arg0: i32, %arg1: memref<2x4x640xf32, #tpu.memory_space<vmem>>, %arg2: memref<1x384xf32, #tpu.memory_space<vmem>>, %arg3: memref<8x36xf32, #tpu.memory_space<vmem>>, %arg4: memref<8x1xf32, #tpu.memory_space<vmem>>, %arg5: memref<16x72xf32, #tpu.memory_space<vmem>>, %arg6: memref<16x1xf32, #tpu.memory_space<vmem>>, %arg7: memref<10x16x384xf32, #tpu.memory_space<vmem>>, %arg8: memref<1x10xf32, #tpu.memory_space<vmem>>, %arg9: memref<2x8x384xf32, #tpu.memory_space<vmem>>, %arg10: memref<2x16x384xf32, #tpu.memory_space<vmem>>, %arg11: memref<2x1x10xf32, #tpu.memory_space<vmem>>, %arg12: memref<8x640xf32, #tpu.memory_space<vmem>>) attributes {dimension_semantics = [#tpu.dimension_semantics<parallel>], iteration_bounds = array<i64: 1>, scalar_prefetch = 0 : i64, scratch_operands = 1 : i64, tpu.core_type = #tpu.core_type<tc>, window_params = [{transform_indices = @transform_0, window_bounds = array<i64: 2, 4, 640>}, {pipeline_mode = #tpu.pipeline_mode<synchronous>, transform_indices = @transform_1, window_bounds = array<i64: 1, 384>}, {pipeline_mode = #tpu.pipeline_mode<synchronous>, transform_indices = @transform_2, window_bounds = array<i64: 8, 36>}, {pipeline_mode = #tpu.pipeline_mode<synchronous>, transform_indices = @transform_3, window_bounds = array<i64: 8, 1>}, {pipeline_mode = #tpu.pipeline_mode<synchronous>, transform_indices = @transform_4, window_bounds = array<i64: 16, 72>}, {pipeline_mode = #tpu.pipeline_mode<synchronous>, transform_indices = @transform_5, window_bounds = array<i64: 16, 1>}, {pipeline_mode = #tpu.pipeline_mode<synchronous>, transform_indices = @transform_6, window_bounds = array<i64: 10, 16, 384>}, {pipeline_mode = #tpu.pipeline_mode<synchronous>, transform_indices = @transform_7, window_bounds = array<i64: 1, 10>}, {transform_indices = @transform_8, window_bounds = array<i64: 2, 8, 384>}, {transform_indices = @transform_9, window_bounds = array<i64: 2, 16, 384>}, {transform_indices = @transform_10, window_bounds = array<i64: 2, 1, 10>}]} {
    %cst = arith.constant 0.000000e+00 : f32
    %0 = vector.broadcast %cst : f32 to vector<8x128xf32>
    %c0 = arith.constant 0 : index
    %c0_0 = arith.constant 0 : index
    %1 = vector.load %arg12[%c0, %c0_0] : memref<8x640xf32, #tpu.memory_space<vmem>>, vector<8x128xf32>
    tpu.vector_store %arg12[%c0, %c0_0], %0 {strides = array<i32>} : memref<8x640xf32, #tpu.memory_space<vmem>>, vector<8x128xf32>,
    %c0_1 = arith.constant 0 : index
    %c512 = arith.constant 512 : index
    %2 = vector.load %arg12[%c0_1, %c512] : memref<8x640xf32, #tpu.memory_space<vmem>>, vector<8x128xf32>
    tpu.vector_store %arg12[%c0_1, %c512], %0 {strides = array<i32>} : memref<8x640xf32, #tpu.memory_space<vmem>>, vector<8x128xf32>,
    %c0_2 = arith.constant 0 : index
    %c0_3 = arith.constant 0 : index
    %3 = vector.load %arg2[%c0_2, %c0_3] : memref<1x384xf32, #tpu.memory_space<vmem>>, vector<1x384xf32>
    %c0_4 = arith.constant 0 : index
    %c0_5 = arith.constant 0 : index
    %4 = vector.load %arg3[%c0_4, %c0_5] : memref<8x36xf32, #tpu.memory_space<vmem>>, vector<8x36xf32>
    %c0_6 = arith.constant 0 : index
    %c0_7 = arith.constant 0 : index
    %5 = vector.load %arg4[%c0_6, %c0_7] : memref<8x1xf32, #tpu.memory_space<vmem>>, vector<8x1xf32>
    %c0_8 = arith.constant 0 : index
    %c0_9 = arith.constant 0 : index
    %6 = vector.load %arg5[%c0_8, %c0_9] : memref<16x72xf32, #tpu.memory_space<vmem>>, vector<16x72xf32>
    %c0_10 = arith.constant 0 : index
    %c0_11 = arith.constant 0 : index
    %7 = vector.load %arg6[%c0_10, %c0_11] : memref<16x1xf32, #tpu.memory_space<vmem>>, vector<16x1xf32>
    %c0_12 = arith.constant 0 : index
    %c0_13 = arith.constant 0 : index
    %8 = vector.load %arg8[%c0_12, %c0_13] : memref<1x10xf32, #tpu.memory_space<vmem>>, vector<1x10xf32>
    %c0_14 = arith.constant 0 : index
    %c0_15 = arith.constant 0 : index
    %c0_16 = arith.constant 0 : index
    %9 = vector.load %arg1[%c0_14, %c0_15, %c0_16] : memref<2x4x640xf32, #tpu.memory_space<vmem>>, vector<1x4x640xf32>
    %10 = vector.shape_cast %9 : vector<1x4x640xf32> to vector<4x640xf32>
    %11 = vector.extract_strided_slice %10 {offsets = [0, 109], sizes = [4, 384], strides = [1, 1]} : vector<4x640xf32> to vector<4x384xf32>
    %12 = vector.extract_strided_slice %10 {offsets = [0, 110], sizes = [4, 384], strides = [1, 1]} : vector<4x640xf32> to vector<4x384xf32>
    %13 = vector.extract_strided_slice %10 {offsets = [0, 111], sizes = [4, 384], strides = [1, 1]} : vector<4x640xf32> to vector<4x384xf32>
    %14 = vector.extract_strided_slice %10 {offsets = [0, 127], sizes = [4, 384], strides = [1, 1]} : vector<4x640xf32> to vector<4x384xf32>
    %15 = vector.extract_strided_slice %10 {offsets = [0, 128], sizes = [4, 384], strides = [1, 1]} : vector<4x640xf32> to vector<4x384xf32>
    %16 = vector.extract_strided_slice %10 {offsets = [0, 129], sizes = [4, 384], strides = [1, 1]} : vector<4x640xf32> to vector<4x384xf32>
    %17 = vector.extract_strided_slice %10 {offsets = [0, 145], sizes = [4, 384], strides = [1, 1]} : vector<4x640xf32> to vector<4x384xf32>
    %18 = vector.extract_strided_slice %10 {offsets = [0, 146], sizes = [4, 384], strides = [1, 1]} : vector<4x640xf32> to vector<4x384xf32>
    %19 = vector.extract_strided_slice %10 {offsets = [0, 147], sizes = [4, 384], strides = [1, 1]} : vector<4x640xf32> to vector<4x384xf32>
    %20 = tpu.concatenate %11, %12, %13, %14, %15, %16, %17, %18, %19 in 0 : vector<4x384xf32>, vector<4x384xf32>, vector<4x384xf32>, vector<4x384xf32>, vector<4x384xf32>, vector<4x384xf32>, vector<4x384xf32>, vector<4x384xf32>, vector<4x384xf32> -> vector<36x384xf32>
    %cst_17 = arith.constant dense<0.000000e+00> : vector<8x384xf32>
    %21 = tpu.matmul %4, %20, %cst_17 {dimension_numbers = #tpu.dot_dimension_numbers<[1], [0], [0], [1], [0, 0, 1, 1], [], []>} : vector<8x36xf32>, vector<36x384xf32>, vector<8x384xf32> -> vector<8x384xf32>
    %22 = vector.broadcast %5 : vector<8x1xf32> to vector<8x384xf32>
    %23 = arith.addf %21, %22 : vector<8x384xf32>
    %cst_18 = arith.constant 0.000000e+00 : f32
    %24 = vector.broadcast %cst_18 : f32 to vector<8x384xf32>
    %25 = arith.maximumf %23, %24 : vector<8x384xf32>
    %26 = vector.broadcast %3 : vector<1x384xf32> to vector<8x384xf32>
    %27 = arith.mulf %25, %26 : vector<8x384xf32>
    %c0_19 = arith.constant 0 : index
    %c0_20 = arith.constant 0 : index
    %c0_21 = arith.constant 0 : index
    %28 = vector.load %arg9[%c0_19, %c0_20, %c0_21] : memref<2x8x384xf32, #tpu.memory_space<vmem>>, vector<1x8x384xf32>
    %29 = vector.shape_cast %28 : vector<1x8x384xf32> to vector<8x384xf32>
    %30 = vector.shape_cast %27 : vector<8x384xf32> to vector<1x8x384xf32>
    tpu.vector_store %arg9[%c0_19, %c0_20, %c0_21], %30 {strides = array<i32>} : memref<2x8x384xf32, #tpu.memory_space<vmem>>, vector<1x8x384xf32>,
    %c0_22 = arith.constant 0 : index
    %c128 = arith.constant 128 : index
    %31 = vector.load %arg12[%c0_22, %c128] : memref<8x640xf32, #tpu.memory_space<vmem>>, vector<8x384xf32>
    tpu.vector_store %arg12[%c0_22, %c128], %27 {strides = array<i32>} : memref<8x640xf32, #tpu.memory_space<vmem>>, vector<8x384xf32>,
    %c0_23 = arith.constant 0 : index
    %c109 = arith.constant 109 : index
    %32 = vector.load %arg12[%c0_23, %c109] : memref<8x640xf32, #tpu.memory_space<vmem>>, vector<8x384xf32>
    %c0_24 = arith.constant 0 : index
    %c110 = arith.constant 110 : index
    %33 = vector.load %arg12[%c0_24, %c110] : memref<8x640xf32, #tpu.memory_space<vmem>>, vector<8x384xf32>
    %c0_25 = arith.constant 0 : index
    %c111 = arith.constant 111 : index
    %34 = vector.load %arg12[%c0_25, %c111] : memref<8x640xf32, #tpu.memory_space<vmem>>, vector<8x384xf32>
    %c0_26 = arith.constant 0 : index
    %c127 = arith.constant 127 : index
    %35 = vector.load %arg12[%c0_26, %c127] : memref<8x640xf32, #tpu.memory_space<vmem>>, vector<8x384xf32>
    %c0_27 = arith.constant 0 : index
    %c128_28 = arith.constant 128 : index
    %36 = vector.load %arg12[%c0_27, %c128_28] : memref<8x640xf32, #tpu.memory_space<vmem>>, vector<8x384xf32>
    %c0_29 = arith.constant 0 : index
    %c129 = arith.constant 129 : index
    %37 = vector.load %arg12[%c0_29, %c129] : memref<8x640xf32, #tpu.memory_space<vmem>>, vector<8x384xf32>
    %c0_30 = arith.constant 0 : index
    %c145 = arith.constant 145 : index
    %38 = vector.load %arg12[%c0_30, %c145] : memref<8x640xf32, #tpu.memory_space<vmem>>, vector<8x384xf32>
    %c0_31 = arith.constant 0 : index
    %c146 = arith.constant 146 : index
    %39 = vector.load %arg12[%c0_31, %c146] : memref<8x640xf32, #tpu.memory_space<vmem>>, vector<8x384xf32>
    %c0_32 = arith.constant 0 : index
    %c147 = arith.constant 147 : index
    %40 = vector.load %arg12[%c0_32, %c147] : memref<8x640xf32, #tpu.memory_space<vmem>>, vector<8x384xf32>
    %41 = tpu.concatenate %32, %33, %34, %35, %36, %37, %38, %39, %40 in 0 : vector<8x384xf32>, vector<8x384xf32>, vector<8x384xf32>, vector<8x384xf32>, vector<8x384xf32>, vector<8x384xf32>, vector<8x384xf32>, vector<8x384xf32>, vector<8x384xf32> -> vector<72x384xf32>
    %cst_33 = arith.constant dense<0.000000e+00> : vector<16x384xf32>
    %42 = tpu.matmul %6, %41, %cst_33 {dimension_numbers = #tpu.dot_dimension_numbers<[1], [0], [0], [1], [0, 0, 1, 1], [], []>} : vector<16x72xf32>, vector<72x384xf32>, vector<16x384xf32> -> vector<16x384xf32>
    %43 = vector.broadcast %7 : vector<16x1xf32> to vector<16x384xf32>
    %44 = arith.addf %42, %43 : vector<16x384xf32>
    %cst_34 = arith.constant 0.000000e+00 : f32
    %45 = vector.broadcast %cst_34 : f32 to vector<16x384xf32>
    %46 = arith.maximumf %44, %45 : vector<16x384xf32>
    %c0_35 = arith.constant 0 : index
    %c0_36 = arith.constant 0 : index
    %c0_37 = arith.constant 0 : index
    %47 = vector.load %arg10[%c0_35, %c0_36, %c0_37] : memref<2x16x384xf32, #tpu.memory_space<vmem>>, vector<1x16x384xf32>
    %48 = vector.shape_cast %47 : vector<1x16x384xf32> to vector<16x384xf32>
    %49 = vector.shape_cast %46 : vector<16x384xf32> to vector<1x16x384xf32>
    tpu.vector_store %arg10[%c0_35, %c0_36, %c0_37], %49 {strides = array<i32>} : memref<2x16x384xf32, #tpu.memory_space<vmem>>, vector<1x16x384xf32>,
    %c0_38 = arith.constant 0 : index
    %c0_39 = arith.constant 0 : index
    %c0_40 = arith.constant 0 : index
    %50 = vector.load %arg7[%c0_38, %c0_39, %c0_40] : memref<10x16x384xf32, #tpu.memory_space<vmem>>, vector<1x16x384xf32>
    %51 = vector.shape_cast %50 : vector<1x16x384xf32> to vector<16x384xf32>
    %52 = arith.mulf %51, %46 : vector<16x384xf32>
    %53 = vector.shape_cast %52 : vector<16x384xf32> to vector<1x16x384xf32>
    %cst_41 = arith.constant dense<0.000000e+00> : vector<1xf32>
    %54 = vector.multi_reduction <add>, %53, %cst_41 [1, 2] : vector<1x16x384xf32> to vector<1xf32>
    %55 = vector.shape_cast %54 : vector<1xf32> to vector<1x1x1xf32>
    %56 = vector.extract %55[0, 0, 0] : f32 from vector<1x1x1xf32>
    %57 = vector.broadcast %56 : f32 to vector<1x1xf32>
    %c1 = arith.constant 1 : index
    %c0_42 = arith.constant 0 : index
    %c0_43 = arith.constant 0 : index
    %58 = vector.load %arg7[%c1, %c0_42, %c0_43] : memref<10x16x384xf32, #tpu.memory_space<vmem>>, vector<1x16x384xf32>
    %59 = vector.shape_cast %58 : vector<1x16x384xf32> to vector<16x384xf32>
    %60 = arith.mulf %59, %46 : vector<16x384xf32>
    %61 = vector.shape_cast %60 : vector<16x384xf32> to vector<1x16x384xf32>
    %cst_44 = arith.constant dense<0.000000e+00> : vector<1xf32>
    %62 = vector.multi_reduction <add>, %61, %cst_44 [1, 2] : vector<1x16x384xf32> to vector<1xf32>
    %63 = vector.shape_cast %62 : vector<1xf32> to vector<1x1x1xf32>
    %64 = vector.extract %63[0, 0, 0] : f32 from vector<1x1x1xf32>
    %65 = vector.broadcast %64 : f32 to vector<1x1xf32>
    %c2 = arith.constant 2 : index
    %c0_45 = arith.constant 0 : index
    %c0_46 = arith.constant 0 : index
    %66 = vector.load %arg7[%c2, %c0_45, %c0_46] : memref<10x16x384xf32, #tpu.memory_space<vmem>>, vector<1x16x384xf32>
    %67 = vector.shape_cast %66 : vector<1x16x384xf32> to vector<16x384xf32>
    %68 = arith.mulf %67, %46 : vector<16x384xf32>
    %69 = vector.shape_cast %68 : vector<16x384xf32> to vector<1x16x384xf32>
    %cst_47 = arith.constant dense<0.000000e+00> : vector<1xf32>
    %70 = vector.multi_reduction <add>, %69, %cst_47 [1, 2] : vector<1x16x384xf32> to vector<1xf32>
    %71 = vector.shape_cast %70 : vector<1xf32> to vector<1x1x1xf32>
    %72 = vector.extract %71[0, 0, 0] : f32 from vector<1x1x1xf32>
    %73 = vector.broadcast %72 : f32 to vector<1x1xf32>
    %c3 = arith.constant 3 : index
    %c0_48 = arith.constant 0 : index
    %c0_49 = arith.constant 0 : index
    %74 = vector.load %arg7[%c3, %c0_48, %c0_49] : memref<10x16x384xf32, #tpu.memory_space<vmem>>, vector<1x16x384xf32>
    %75 = vector.shape_cast %74 : vector<1x16x384xf32> to vector<16x384xf32>
    %76 = arith.mulf %75, %46 : vector<16x384xf32>
    %77 = vector.shape_cast %76 : vector<16x384xf32> to vector<1x16x384xf32>
    %cst_50 = arith.constant dense<0.000000e+00> : vector<1xf32>
    %78 = vector.multi_reduction <add>, %77, %cst_50 [1, 2] : vector<1x16x384xf32> to vector<1xf32>
    %79 = vector.shape_cast %78 : vector<1xf32> to vector<1x1x1xf32>
    %80 = vector.extract %79[0, 0, 0] : f32 from vector<1x1x1xf32>
    %81 = vector.broadcast %80 : f32 to vector<1x1xf32>
    %c4 = arith.constant 4 : index
    %c0_51 = arith.constant 0 : index
    %c0_52 = arith.constant 0 : index
    %82 = vector.load %arg7[%c4, %c0_51, %c0_52] : memref<10x16x384xf32, #tpu.memory_space<vmem>>, vector<1x16x384xf32>
    %83 = vector.shape_cast %82 : vector<1x16x384xf32> to vector<16x384xf32>
    %84 = arith.mulf %83, %46 : vector<16x384xf32>
    %85 = vector.shape_cast %84 : vector<16x384xf32> to vector<1x16x384xf32>
    %cst_53 = arith.constant dense<0.000000e+00> : vector<1xf32>
    %86 = vector.multi_reduction <add>, %85, %cst_53 [1, 2] : vector<1x16x384xf32> to vector<1xf32>
    %87 = vector.shape_cast %86 : vector<1xf32> to vector<1x1x1xf32>
    %88 = vector.extract %87[0, 0, 0] : f32 from vector<1x1x1xf32>
    %89 = vector.broadcast %88 : f32 to vector<1x1xf32>
    %c5 = arith.constant 5 : index
    %c0_54 = arith.constant 0 : index
    %c0_55 = arith.constant 0 : index
    %90 = vector.load %arg7[%c5, %c0_54, %c0_55] : memref<10x16x384xf32, #tpu.memory_space<vmem>>, vector<1x16x384xf32>
    %91 = vector.shape_cast %90 : vector<1x16x384xf32> to vector<16x384xf32>
    %92 = arith.mulf %91, %46 : vector<16x384xf32>
    %93 = vector.shape_cast %92 : vector<16x384xf32> to vector<1x16x384xf32>
    %cst_56 = arith.constant dense<0.000000e+00> : vector<1xf32>
    %94 = vector.multi_reduction <add>, %93, %cst_56 [1, 2] : vector<1x16x384xf32> to vector<1xf32>
    %95 = vector.shape_cast %94 : vector<1xf32> to vector<1x1x1xf32>
    %96 = vector.extract %95[0, 0, 0] : f32 from vector<1x1x1xf32>
    %97 = vector.broadcast %96 : f32 to vector<1x1xf32>
    %c6 = arith.constant 6 : index
    %c0_57 = arith.constant 0 : index
    %c0_58 = arith.constant 0 : index
    %98 = vector.load %arg7[%c6, %c0_57, %c0_58] : memref<10x16x384xf32, #tpu.memory_space<vmem>>, vector<1x16x384xf32>
    %99 = vector.shape_cast %98 : vector<1x16x384xf32> to vector<16x384xf32>
    %100 = arith.mulf %99, %46 : vector<16x384xf32>
    %101 = vector.shape_cast %100 : vector<16x384xf32> to vector<1x16x384xf32>
    %cst_59 = arith.constant dense<0.000000e+00> : vector<1xf32>
    %102 = vector.multi_reduction <add>, %101, %cst_59 [1, 2] : vector<1x16x384xf32> to vector<1xf32>
    %103 = vector.shape_cast %102 : vector<1xf32> to vector<1x1x1xf32>
    %104 = vector.extract %103[0, 0, 0] : f32 from vector<1x1x1xf32>
    %105 = vector.broadcast %104 : f32 to vector<1x1xf32>
    %c7 = arith.constant 7 : index
    %c0_60 = arith.constant 0 : index
    %c0_61 = arith.constant 0 : index
    %106 = vector.load %arg7[%c7, %c0_60, %c0_61] : memref<10x16x384xf32, #tpu.memory_space<vmem>>, vector<1x16x384xf32>
    %107 = vector.shape_cast %106 : vector<1x16x384xf32> to vector<16x384xf32>
    %108 = arith.mulf %107, %46 : vector<16x384xf32>
    %109 = vector.shape_cast %108 : vector<16x384xf32> to vector<1x16x384xf32>
    %cst_62 = arith.constant dense<0.000000e+00> : vector<1xf32>
    %110 = vector.multi_reduction <add>, %109, %cst_62 [1, 2] : vector<1x16x384xf32> to vector<1xf32>
    %111 = vector.shape_cast %110 : vector<1xf32> to vector<1x1x1xf32>
    %112 = vector.extract %111[0, 0, 0] : f32 from vector<1x1x1xf32>
    %113 = vector.broadcast %112 : f32 to vector<1x1xf32>
    %c8 = arith.constant 8 : index
    %c0_63 = arith.constant 0 : index
    %c0_64 = arith.constant 0 : index
    %114 = vector.load %arg7[%c8, %c0_63, %c0_64] : memref<10x16x384xf32, #tpu.memory_space<vmem>>, vector<1x16x384xf32>
    %115 = vector.shape_cast %114 : vector<1x16x384xf32> to vector<16x384xf32>
    %116 = arith.mulf %115, %46 : vector<16x384xf32>
    %117 = vector.shape_cast %116 : vector<16x384xf32> to vector<1x16x384xf32>
    %cst_65 = arith.constant dense<0.000000e+00> : vector<1xf32>
    %118 = vector.multi_reduction <add>, %117, %cst_65 [1, 2] : vector<1x16x384xf32> to vector<1xf32>
    %119 = vector.shape_cast %118 : vector<1xf32> to vector<1x1x1xf32>
    %120 = vector.extract %119[0, 0, 0] : f32 from vector<1x1x1xf32>
    %121 = vector.broadcast %120 : f32 to vector<1x1xf32>
    %c9 = arith.constant 9 : index
    %c0_66 = arith.constant 0 : index
    %c0_67 = arith.constant 0 : index
    %122 = vector.load %arg7[%c9, %c0_66, %c0_67] : memref<10x16x384xf32, #tpu.memory_space<vmem>>, vector<1x16x384xf32>
    %123 = vector.shape_cast %122 : vector<1x16x384xf32> to vector<16x384xf32>
    %124 = arith.mulf %123, %46 : vector<16x384xf32>
    %125 = vector.shape_cast %124 : vector<16x384xf32> to vector<1x16x384xf32>
    %cst_68 = arith.constant dense<0.000000e+00> : vector<1xf32>
    %126 = vector.multi_reduction <add>, %125, %cst_68 [1, 2] : vector<1x16x384xf32> to vector<1xf32>
    %127 = vector.shape_cast %126 : vector<1xf32> to vector<1x1x1xf32>
    %128 = vector.extract %127[0, 0, 0] : f32 from vector<1x1x1xf32>
    %129 = vector.broadcast %128 : f32 to vector<1x1xf32>
    %130 = tpu.concatenate %57, %65, %73, %81, %89, %97, %105, %113, %121, %129 in 1 : vector<1x1xf32>, vector<1x1xf32>, vector<1x1xf32>, vector<1x1xf32>, vector<1x1xf32>, vector<1x1xf32>, vector<1x1xf32>, vector<1x1xf32>, vector<1x1xf32>, vector<1x1xf32> -> vector<1x10xf32>
    %131 = arith.addf %130, %8 : vector<1x10xf32>
    %c0_69 = arith.constant 0 : index
    %c0_70 = arith.constant 0 : index
    %c0_71 = arith.constant 0 : index
    %132 = vector.load %arg11[%c0_69, %c0_70, %c0_71] : memref<2x1x10xf32, #tpu.memory_space<vmem>>, vector<1x1x10xf32>
    %133 = vector.shape_cast %132 : vector<1x1x10xf32> to vector<1x10xf32>
    %134 = vector.shape_cast %131 : vector<1x10xf32> to vector<1x1x10xf32>
    tpu.vector_store %arg11[%c0_69, %c0_70, %c0_71], %134 {strides = array<i32>} : memref<2x1x10xf32, #tpu.memory_space<vmem>>, vector<1x1x10xf32>,
    %c1_72 = arith.constant 1 : index
    %c0_73 = arith.constant 0 : index
    %c0_74 = arith.constant 0 : index
    %135 = vector.load %arg1[%c1_72, %c0_73, %c0_74] : memref<2x4x640xf32, #tpu.memory_space<vmem>>, vector<1x4x640xf32>
    %136 = vector.shape_cast %135 : vector<1x4x640xf32> to vector<4x640xf32>
    %137 = vector.extract_strided_slice %136 {offsets = [0, 109], sizes = [4, 384], strides = [1, 1]} : vector<4x640xf32> to vector<4x384xf32>
    %138 = vector.extract_strided_slice %136 {offsets = [0, 110], sizes = [4, 384], strides = [1, 1]} : vector<4x640xf32> to vector<4x384xf32>
    %139 = vector.extract_strided_slice %136 {offsets = [0, 111], sizes = [4, 384], strides = [1, 1]} : vector<4x640xf32> to vector<4x384xf32>
    %140 = vector.extract_strided_slice %136 {offsets = [0, 127], sizes = [4, 384], strides = [1, 1]} : vector<4x640xf32> to vector<4x384xf32>
    %141 = vector.extract_strided_slice %136 {offsets = [0, 128], sizes = [4, 384], strides = [1, 1]} : vector<4x640xf32> to vector<4x384xf32>
    %142 = vector.extract_strided_slice %136 {offsets = [0, 129], sizes = [4, 384], strides = [1, 1]} : vector<4x640xf32> to vector<4x384xf32>
    %143 = vector.extract_strided_slice %136 {offsets = [0, 145], sizes = [4, 384], strides = [1, 1]} : vector<4x640xf32> to vector<4x384xf32>
    %144 = vector.extract_strided_slice %136 {offsets = [0, 146], sizes = [4, 384], strides = [1, 1]} : vector<4x640xf32> to vector<4x384xf32>
    %145 = vector.extract_strided_slice %136 {offsets = [0, 147], sizes = [4, 384], strides = [1, 1]} : vector<4x640xf32> to vector<4x384xf32>
    %146 = tpu.concatenate %137, %138, %139, %140, %141, %142, %143, %144, %145 in 0 : vector<4x384xf32>, vector<4x384xf32>, vector<4x384xf32>, vector<4x384xf32>, vector<4x384xf32>, vector<4x384xf32>, vector<4x384xf32>, vector<4x384xf32>, vector<4x384xf32> -> vector<36x384xf32>
    %cst_75 = arith.constant dense<0.000000e+00> : vector<8x384xf32>
    %147 = tpu.matmul %4, %146, %cst_75 {dimension_numbers = #tpu.dot_dimension_numbers<[1], [0], [0], [1], [0, 0, 1, 1], [], []>} : vector<8x36xf32>, vector<36x384xf32>, vector<8x384xf32> -> vector<8x384xf32>
    %148 = vector.broadcast %5 : vector<8x1xf32> to vector<8x384xf32>
    %149 = arith.addf %147, %148 : vector<8x384xf32>
    %cst_76 = arith.constant 0.000000e+00 : f32
    %150 = vector.broadcast %cst_76 : f32 to vector<8x384xf32>
    %151 = arith.maximumf %149, %150 : vector<8x384xf32>
    %152 = vector.broadcast %3 : vector<1x384xf32> to vector<8x384xf32>
    %153 = arith.mulf %151, %152 : vector<8x384xf32>
    %c1_77 = arith.constant 1 : index
    %c0_78 = arith.constant 0 : index
    %c0_79 = arith.constant 0 : index
    %154 = vector.load %arg9[%c1_77, %c0_78, %c0_79] : memref<2x8x384xf32, #tpu.memory_space<vmem>>, vector<1x8x384xf32>
    %155 = vector.shape_cast %154 : vector<1x8x384xf32> to vector<8x384xf32>
    %156 = vector.shape_cast %153 : vector<8x384xf32> to vector<1x8x384xf32>
    tpu.vector_store %arg9[%c1_77, %c0_78, %c0_79], %156 {strides = array<i32>} : memref<2x8x384xf32, #tpu.memory_space<vmem>>, vector<1x8x384xf32>,
    %c0_80 = arith.constant 0 : index
    %c128_81 = arith.constant 128 : index
    %157 = vector.load %arg12[%c0_80, %c128_81] : memref<8x640xf32, #tpu.memory_space<vmem>>, vector<8x384xf32>
    tpu.vector_store %arg12[%c0_80, %c128_81], %153 {strides = array<i32>} : memref<8x640xf32, #tpu.memory_space<vmem>>, vector<8x384xf32>,
    %c0_82 = arith.constant 0 : index
    %c109_83 = arith.constant 109 : index
    %158 = vector.load %arg12[%c0_82, %c109_83] : memref<8x640xf32, #tpu.memory_space<vmem>>, vector<8x384xf32>
    %c0_84 = arith.constant 0 : index
    %c110_85 = arith.constant 110 : index
    %159 = vector.load %arg12[%c0_84, %c110_85] : memref<8x640xf32, #tpu.memory_space<vmem>>, vector<8x384xf32>
    %c0_86 = arith.constant 0 : index
    %c111_87 = arith.constant 111 : index
    %160 = vector.load %arg12[%c0_86, %c111_87] : memref<8x640xf32, #tpu.memory_space<vmem>>, vector<8x384xf32>
    %c0_88 = arith.constant 0 : index
    %c127_89 = arith.constant 127 : index
    %161 = vector.load %arg12[%c0_88, %c127_89] : memref<8x640xf32, #tpu.memory_space<vmem>>, vector<8x384xf32>
    %c0_90 = arith.constant 0 : index
    %c128_91 = arith.constant 128 : index
    %162 = vector.load %arg12[%c0_90, %c128_91] : memref<8x640xf32, #tpu.memory_space<vmem>>, vector<8x384xf32>
    %c0_92 = arith.constant 0 : index
    %c129_93 = arith.constant 129 : index
    %163 = vector.load %arg12[%c0_92, %c129_93] : memref<8x640xf32, #tpu.memory_space<vmem>>, vector<8x384xf32>
    %c0_94 = arith.constant 0 : index
    %c145_95 = arith.constant 145 : index
    %164 = vector.load %arg12[%c0_94, %c145_95] : memref<8x640xf32, #tpu.memory_space<vmem>>, vector<8x384xf32>
    %c0_96 = arith.constant 0 : index
    %c146_97 = arith.constant 146 : index
    %165 = vector.load %arg12[%c0_96, %c146_97] : memref<8x640xf32, #tpu.memory_space<vmem>>, vector<8x384xf32>
    %c0_98 = arith.constant 0 : index
    %c147_99 = arith.constant 147 : index
    %166 = vector.load %arg12[%c0_98, %c147_99] : memref<8x640xf32, #tpu.memory_space<vmem>>, vector<8x384xf32>
    %167 = tpu.concatenate %158, %159, %160, %161, %162, %163, %164, %165, %166 in 0 : vector<8x384xf32>, vector<8x384xf32>, vector<8x384xf32>, vector<8x384xf32>, vector<8x384xf32>, vector<8x384xf32>, vector<8x384xf32>, vector<8x384xf32>, vector<8x384xf32> -> vector<72x384xf32>
    %cst_100 = arith.constant dense<0.000000e+00> : vector<16x384xf32>
    %168 = tpu.matmul %6, %167, %cst_100 {dimension_numbers = #tpu.dot_dimension_numbers<[1], [0], [0], [1], [0, 0, 1, 1], [], []>} : vector<16x72xf32>, vector<72x384xf32>, vector<16x384xf32> -> vector<16x384xf32>
    %169 = vector.broadcast %7 : vector<16x1xf32> to vector<16x384xf32>
    %170 = arith.addf %168, %169 : vector<16x384xf32>
    %cst_101 = arith.constant 0.000000e+00 : f32
    %171 = vector.broadcast %cst_101 : f32 to vector<16x384xf32>
    %172 = arith.maximumf %170, %171 : vector<16x384xf32>
    %c1_102 = arith.constant 1 : index
    %c0_103 = arith.constant 0 : index
    %c0_104 = arith.constant 0 : index
    %173 = vector.load %arg10[%c1_102, %c0_103, %c0_104] : memref<2x16x384xf32, #tpu.memory_space<vmem>>, vector<1x16x384xf32>
    %174 = vector.shape_cast %173 : vector<1x16x384xf32> to vector<16x384xf32>
    %175 = vector.shape_cast %172 : vector<16x384xf32> to vector<1x16x384xf32>
    tpu.vector_store %arg10[%c1_102, %c0_103, %c0_104], %175 {strides = array<i32>} : memref<2x16x384xf32, #tpu.memory_space<vmem>>, vector<1x16x384xf32>,
    %c0_105 = arith.constant 0 : index
    %c0_106 = arith.constant 0 : index
    %c0_107 = arith.constant 0 : index
    %176 = vector.load %arg7[%c0_105, %c0_106, %c0_107] : memref<10x16x384xf32, #tpu.memory_space<vmem>>, vector<1x16x384xf32>
    %177 = vector.shape_cast %176 : vector<1x16x384xf32> to vector<16x384xf32>
    %178 = arith.mulf %177, %172 : vector<16x384xf32>
    %179 = vector.shape_cast %178 : vector<16x384xf32> to vector<1x16x384xf32>
    %cst_108 = arith.constant dense<0.000000e+00> : vector<1xf32>
    %180 = vector.multi_reduction <add>, %179, %cst_108 [1, 2] : vector<1x16x384xf32> to vector<1xf32>
    %181 = vector.shape_cast %180 : vector<1xf32> to vector<1x1x1xf32>
    %182 = vector.extract %181[0, 0, 0] : f32 from vector<1x1x1xf32>
    %183 = vector.broadcast %182 : f32 to vector<1x1xf32>
    %c1_109 = arith.constant 1 : index
    %c0_110 = arith.constant 0 : index
    %c0_111 = arith.constant 0 : index
    %184 = vector.load %arg7[%c1_109, %c0_110, %c0_111] : memref<10x16x384xf32, #tpu.memory_space<vmem>>, vector<1x16x384xf32>
    %185 = vector.shape_cast %184 : vector<1x16x384xf32> to vector<16x384xf32>
    %186 = arith.mulf %185, %172 : vector<16x384xf32>
    %187 = vector.shape_cast %186 : vector<16x384xf32> to vector<1x16x384xf32>
    %cst_112 = arith.constant dense<0.000000e+00> : vector<1xf32>
    %188 = vector.multi_reduction <add>, %187, %cst_112 [1, 2] : vector<1x16x384xf32> to vector<1xf32>
    %189 = vector.shape_cast %188 : vector<1xf32> to vector<1x1x1xf32>
    %190 = vector.extract %189[0, 0, 0] : f32 from vector<1x1x1xf32>
    %191 = vector.broadcast %190 : f32 to vector<1x1xf32>
    %c2_113 = arith.constant 2 : index
    %c0_114 = arith.constant 0 : index
    %c0_115 = arith.constant 0 : index
    %192 = vector.load %arg7[%c2_113, %c0_114, %c0_115] : memref<10x16x384xf32, #tpu.memory_space<vmem>>, vector<1x16x384xf32>
    %193 = vector.shape_cast %192 : vector<1x16x384xf32> to vector<16x384xf32>
    %194 = arith.mulf %193, %172 : vector<16x384xf32>
    %195 = vector.shape_cast %194 : vector<16x384xf32> to vector<1x16x384xf32>
    %cst_116 = arith.constant dense<0.000000e+00> : vector<1xf32>
    %196 = vector.multi_reduction <add>, %195, %cst_116 [1, 2] : vector<1x16x384xf32> to vector<1xf32>
    %197 = vector.shape_cast %196 : vector<1xf32> to vector<1x1x1xf32>
    %198 = vector.extract %197[0, 0, 0] : f32 from vector<1x1x1xf32>
    %199 = vector.broadcast %198 : f32 to vector<1x1xf32>
    %c3_117 = arith.constant 3 : index
    %c0_118 = arith.constant 0 : index
    %c0_119 = arith.constant 0 : index
    %200 = vector.load %arg7[%c3_117, %c0_118, %c0_119] : memref<10x16x384xf32, #tpu.memory_space<vmem>>, vector<1x16x384xf32>
    %201 = vector.shape_cast %200 : vector<1x16x384xf32> to vector<16x384xf32>
    %202 = arith.mulf %201, %172 : vector<16x384xf32>
    %203 = vector.shape_cast %202 : vector<16x384xf32> to vector<1x16x384xf32>
    %cst_120 = arith.constant dense<0.000000e+00> : vector<1xf32>
    %204 = vector.multi_reduction <add>, %203, %cst_120 [1, 2] : vector<1x16x384xf32> to vector<1xf32>
    %205 = vector.shape_cast %204 : vector<1xf32> to vector<1x1x1xf32>
    %206 = vector.extract %205[0, 0, 0] : f32 from vector<1x1x1xf32>
    %207 = vector.broadcast %206 : f32 to vector<1x1xf32>
    %c4_121 = arith.constant 4 : index
    %c0_122 = arith.constant 0 : index
    %c0_123 = arith.constant 0 : index
    %208 = vector.load %arg7[%c4_121, %c0_122, %c0_123] : memref<10x16x384xf32, #tpu.memory_space<vmem>>, vector<1x16x384xf32>
    %209 = vector.shape_cast %208 : vector<1x16x384xf32> to vector<16x384xf32>
    %210 = arith.mulf %209, %172 : vector<16x384xf32>
    %211 = vector.shape_cast %210 : vector<16x384xf32> to vector<1x16x384xf32>
    %cst_124 = arith.constant dense<0.000000e+00> : vector<1xf32>
    %212 = vector.multi_reduction <add>, %211, %cst_124 [1, 2] : vector<1x16x384xf32> to vector<1xf32>
    %213 = vector.shape_cast %212 : vector<1xf32> to vector<1x1x1xf32>
    %214 = vector.extract %213[0, 0, 0] : f32 from vector<1x1x1xf32>
    %215 = vector.broadcast %214 : f32 to vector<1x1xf32>
    %c5_125 = arith.constant 5 : index
    %c0_126 = arith.constant 0 : index
    %c0_127 = arith.constant 0 : index
    %216 = vector.load %arg7[%c5_125, %c0_126, %c0_127] : memref<10x16x384xf32, #tpu.memory_space<vmem>>, vector<1x16x384xf32>
    %217 = vector.shape_cast %216 : vector<1x16x384xf32> to vector<16x384xf32>
    %218 = arith.mulf %217, %172 : vector<16x384xf32>
    %219 = vector.shape_cast %218 : vector<16x384xf32> to vector<1x16x384xf32>
    %cst_128 = arith.constant dense<0.000000e+00> : vector<1xf32>
    %220 = vector.multi_reduction <add>, %219, %cst_128 [1, 2] : vector<1x16x384xf32> to vector<1xf32>
    %221 = vector.shape_cast %220 : vector<1xf32> to vector<1x1x1xf32>
    %222 = vector.extract %221[0, 0, 0] : f32 from vector<1x1x1xf32>
    %223 = vector.broadcast %222 : f32 to vector<1x1xf32>
    %c6_129 = arith.constant 6 : index
    %c0_130 = arith.constant 0 : index
    %c0_131 = arith.constant 0 : index
    %224 = vector.load %arg7[%c6_129, %c0_130, %c0_131] : memref<10x16x384xf32, #tpu.memory_space<vmem>>, vector<1x16x384xf32>
    %225 = vector.shape_cast %224 : vector<1x16x384xf32> to vector<16x384xf32>
    %226 = arith.mulf %225, %172 : vector<16x384xf32>
    %227 = vector.shape_cast %226 : vector<16x384xf32> to vector<1x16x384xf32>
    %cst_132 = arith.constant dense<0.000000e+00> : vector<1xf32>
    %228 = vector.multi_reduction <add>, %227, %cst_132 [1, 2] : vector<1x16x384xf32> to vector<1xf32>
    %229 = vector.shape_cast %228 : vector<1xf32> to vector<1x1x1xf32>
    %230 = vector.extract %229[0, 0, 0] : f32 from vector<1x1x1xf32>
    %231 = vector.broadcast %230 : f32 to vector<1x1xf32>
    %c7_133 = arith.constant 7 : index
    %c0_134 = arith.constant 0 : index
    %c0_135 = arith.constant 0 : index
    %232 = vector.load %arg7[%c7_133, %c0_134, %c0_135] : memref<10x16x384xf32, #tpu.memory_space<vmem>>, vector<1x16x384xf32>
    %233 = vector.shape_cast %232 : vector<1x16x384xf32> to vector<16x384xf32>
    %234 = arith.mulf %233, %172 : vector<16x384xf32>
    %235 = vector.shape_cast %234 : vector<16x384xf32> to vector<1x16x384xf32>
    %cst_136 = arith.constant dense<0.000000e+00> : vector<1xf32>
    %236 = vector.multi_reduction <add>, %235, %cst_136 [1, 2] : vector<1x16x384xf32> to vector<1xf32>
    %237 = vector.shape_cast %236 : vector<1xf32> to vector<1x1x1xf32>
    %238 = vector.extract %237[0, 0, 0] : f32 from vector<1x1x1xf32>
    %239 = vector.broadcast %238 : f32 to vector<1x1xf32>
    %c8_137 = arith.constant 8 : index
    %c0_138 = arith.constant 0 : index
    %c0_139 = arith.constant 0 : index
    %240 = vector.load %arg7[%c8_137, %c0_138, %c0_139] : memref<10x16x384xf32, #tpu.memory_space<vmem>>, vector<1x16x384xf32>
    %241 = vector.shape_cast %240 : vector<1x16x384xf32> to vector<16x384xf32>
    %242 = arith.mulf %241, %172 : vector<16x384xf32>
    %243 = vector.shape_cast %242 : vector<16x384xf32> to vector<1x16x384xf32>
    %cst_140 = arith.constant dense<0.000000e+00> : vector<1xf32>
    %244 = vector.multi_reduction <add>, %243, %cst_140 [1, 2] : vector<1x16x384xf32> to vector<1xf32>
    %245 = vector.shape_cast %244 : vector<1xf32> to vector<1x1x1xf32>
    %246 = vector.extract %245[0, 0, 0] : f32 from vector<1x1x1xf32>
    %247 = vector.broadcast %246 : f32 to vector<1x1xf32>
    %c9_141 = arith.constant 9 : index
    %c0_142 = arith.constant 0 : index
    %c0_143 = arith.constant 0 : index
    %248 = vector.load %arg7[%c9_141, %c0_142, %c0_143] : memref<10x16x384xf32, #tpu.memory_space<vmem>>, vector<1x16x384xf32>
    %249 = vector.shape_cast %248 : vector<1x16x384xf32> to vector<16x384xf32>
    %250 = arith.mulf %249, %172 : vector<16x384xf32>
    %251 = vector.shape_cast %250 : vector<16x384xf32> to vector<1x16x384xf32>
    %cst_144 = arith.constant dense<0.000000e+00> : vector<1xf32>
    %252 = vector.multi_reduction <add>, %251, %cst_144 [1, 2] : vector<1x16x384xf32> to vector<1xf32>
    %253 = vector.shape_cast %252 : vector<1xf32> to vector<1x1x1xf32>
    %254 = vector.extract %253[0, 0, 0] : f32 from vector<1x1x1xf32>
    %255 = vector.broadcast %254 : f32 to vector<1x1xf32>
    %256 = tpu.concatenate %183, %191, %199, %207, %215, %223, %231, %239, %247, %255 in 1 : vector<1x1xf32>, vector<1x1xf32>, vector<1x1xf32>, vector<1x1xf32>, vector<1x1xf32>, vector<1x1xf32>, vector<1x1xf32>, vector<1x1xf32>, vector<1x1xf32>, vector<1x1xf32> -> vector<1x10xf32>
    %257 = arith.addf %256, %8 : vector<1x10xf32>
    %c1_145 = arith.constant 1 : index
    %c0_146 = arith.constant 0 : index
    %c0_147 = arith.constant 0 : index
    %258 = vector.load %arg11[%c1_145, %c0_146, %c0_147] : memref<2x1x10xf32, #tpu.memory_space<vmem>>, vector<1x1x10xf32>
    %259 = vector.shape_cast %258 : vector<1x1x10xf32> to vector<1x10xf32>
    %260 = vector.shape_cast %257 : vector<1x10xf32> to vector<1x1x10xf32>
    tpu.vector_store %arg11[%c1_145, %c0_146, %c0_147], %260 {strides = array<i32>} : memref<2x1x10xf32, #tpu.memory_space<vmem>>, vector<1x1x10xf32>,
    return
  }
  func.func @transform_0(%arg0: i32) -> (i32, i32, i32) {
    %c0_i32 = arith.constant 0 : i32
    %c0_i32_0 = arith.constant 0 : i32
    %c0_i32_1 = arith.constant 0 : i32
    return %arg0, %c0_i32, %c0_i32_0 : i32, i32, i32
  }
  func.func @transform_1(%arg0: i32) -> (i32, i32) {
    %c0_i32 = arith.constant 0 : i32
    %c0_i32_0 = arith.constant 0 : i32
    %c0_i32_1 = arith.constant 0 : i32
    return %c0_i32, %c0_i32_0 : i32, i32
  }
  func.func @transform_2(%arg0: i32) -> (i32, i32) {
    %c0_i32 = arith.constant 0 : i32
    %c0_i32_0 = arith.constant 0 : i32
    %c0_i32_1 = arith.constant 0 : i32
    return %c0_i32, %c0_i32_0 : i32, i32
  }
  func.func @transform_3(%arg0: i32) -> (i32, i32) {
    %c0_i32 = arith.constant 0 : i32
    %c0_i32_0 = arith.constant 0 : i32
    %c0_i32_1 = arith.constant 0 : i32
    return %c0_i32, %c0_i32_0 : i32, i32
  }
  func.func @transform_4(%arg0: i32) -> (i32, i32) {
    %c0_i32 = arith.constant 0 : i32
    %c0_i32_0 = arith.constant 0 : i32
    %c0_i32_1 = arith.constant 0 : i32
    return %c0_i32, %c0_i32_0 : i32, i32
  }
  func.func @transform_5(%arg0: i32) -> (i32, i32) {
    %c0_i32 = arith.constant 0 : i32
    %c0_i32_0 = arith.constant 0 : i32
    %c0_i32_1 = arith.constant 0 : i32
    return %c0_i32, %c0_i32_0 : i32, i32
  }
  func.func @transform_6(%arg0: i32) -> (i32, i32, i32) {
    %c0_i32 = arith.constant 0 : i32
    %c0_i32_0 = arith.constant 0 : i32
    %c0_i32_1 = arith.constant 0 : i32
    %c0_i32_2 = arith.constant 0 : i32
    return %c0_i32, %c0_i32_0, %c0_i32_1 : i32, i32, i32
  }
  func.func @transform_7(%arg0: i32) -> (i32, i32) {
    %c0_i32 = arith.constant 0 : i32
    %c0_i32_0 = arith.constant 0 : i32
    %c0_i32_1 = arith.constant 0 : i32
    return %c0_i32, %c0_i32_0 : i32, i32
  }
  func.func @transform_8(%arg0: i32) -> (i32, i32, i32) {
    %c0_i32 = arith.constant 0 : i32
    %c0_i32_0 = arith.constant 0 : i32
    %c0_i32_1 = arith.constant 0 : i32
    return %arg0, %c0_i32, %c0_i32_0 : i32, i32, i32
  }
  func.func @transform_9(%arg0: i32) -> (i32, i32, i32) {
    %c0_i32 = arith.constant 0 : i32
    %c0_i32_0 = arith.constant 0 : i32
    %c0_i32_1 = arith.constant 0 : i32
    return %arg0, %c0_i32, %c0_i32_0 : i32, i32, i32
  }
  func.func @transform_10(%arg0: i32) -> (i32, i32, i32) {
    %c0_i32 = arith.constant 0 : i32
    %c0_i32_0 = arith.constant 0 : i32
    %c0_i32_1 = arith.constant 0 : i32
    return %arg0, %c0_i32, %c0_i32_0 : i32, i32, i32
  }
}

</mosaic_0001>

<llo_original>
// kernel: tpu_custom_call.1
$region0: #{tpu_custom_call.1}
  #allocation0 [shape = 'u32[]', space=smem, size = 0x4, offset = 0x4, fixed_abs, tag = 'smem constant byte address 0x4 - core index']
  #allocation1 [shape = 'u32[144,128]{1,0:T(1,128)}', space=vmem, size = 0x12000, scoped, tag = 'internal scratch']
  #allocation2 [shape = 'f32[8,640]{1,0:T(8,128)}', space=vmem, size = 0x5000, scoped, tag = 'scratch operand']
  %s0 = inlined_call_operand.hbm [shape: f32[2,4,640], index: 0, kind: input, shape index: {}]
  %s1 = inlined_call_operand.vmem [shape: f32[1,384], index: 1, kind: input, shape index: {}]
  %s2 = inlined_call_operand.vmem [shape: f32[8,36], index: 2, kind: input, shape index: {}]
  %s3 = inlined_call_operand.vmem [shape: f32[8,1], index: 3, kind: input, shape index: {}]
  %s4 = inlined_call_operand.vmem [shape: f32[16,72], index: 4, kind: input, shape index: {}]
  %s5 = inlined_call_operand.vmem [shape: f32[16,1], index: 5, kind: input, shape index: {}]
  %s6 = inlined_call_operand.hbm [shape: f32[10,16,384], index: 6, kind: input, shape index: {}]
  %s7 = inlined_call_operand.vmem [shape: f32[1,10], index: 7, kind: input, shape index: {}]
  %s8 = inlined_call_operand.hbm [shape: f32[2,8,384], index: 8, kind: output, shape index: {0}]
  %s9 = inlined_call_operand.hbm [shape: f32[2,16,384], index: 9, kind: output, shape index: {1}]
  %s10 = inlined_call_operand.hbm [shape: f32[2,1,10], index: 10, kind: output, shape index: {2}]
  %11 = xla_tuple %s8, %s9, %s10
  %s12 = sld [smem:[#allocation0]]
  $region66: #{tpu_custom_call.1} parent=0
    _
  %s14 = ssub.s32 1, %s12
  %s15 = scalar_select 0, %s14, %s12
  $region1: #{tpu_custom_call.1} parent=0
    #allocation3 [shape = 'u8[20480]{0}', space=vmem, size = 0x5000, scoped, tag = 'input window, operand 0, single buffered']
    #allocation4 [shape = 's32[1]{0}', space=sflag, size = 0x4, scoped, tag = 'scoped memory for tpu_custom_call.1']
    #allocation5 [shape = 's32[1]{0}', space=sflag, size = 0x4, scoped, tag = 'scoped memory for tpu_custom_call.1']
    #allocation6 [shape = 'u8[245760]{0}', space=vmem, size = 0x3c000, scoped, tag = 'input window, operand 6, single buffered']
    #allocation7 [shape = 's32[1]{0}', space=sflag, size = 0x4, scoped, tag = 'scoped memory for tpu_custom_call.1']
    #allocation8 [shape = 'u8[24576]{0}', space=vmem, size = 0x6000, scoped, tag = 'output window, operand 0, single buffered']
    #allocation9 [shape = 'u8[49152]{0}', space=vmem, size = 0xc000, scoped, tag = 'output window, operand 1, single buffered']
    #allocation10 [shape = 's32[1]{0}', space=sflag, size = 0x4, scoped, tag = 'scoped memory for tpu_custom_call.1']
    #allocation11 [shape = 'u8[1024]{0}', space=vmem, size = 0x400, scoped, tag = 'output window, operand 2, single buffered']
    %16 = vsyncpa [#allocation4], 0
    %17 = vsyncpa [#allocation7], 0
    %18 = vsyncpa [#allocation5], 0
    %19 = vsyncpa [#allocation10], 0
    // Predicated region
    $region2: #{tpu_custom_call.1} parent=1 // pred_check
      _
    $region3: #{tpu_custom_call.1} parent=1 // pred_check_branch
      %21 = sbr.rel (0) target = $region5
    $region4: #{tpu_custom_call.1} parent=1 // pred_region
      %s23 = ssub.s32 640, 640
      %24 = vsyncadd [#allocation4], %s23
      %s25 = sshll.u32 [#allocation3], 4
      %s26 = int_to_ptr.vmem [resolvable:$true] %s25
      %31 = dma.hbm_to_vmem [thread:$0]  %s0, 640, %s26, [#allocation4], 320, 320, 20
    $region5: #{tpu_custom_call.1} parent=1 // pred_fallthru
      _
    // Predicated region
    $region6: #{tpu_custom_call.1} parent=1 // pred_check
      _
    $region7: #{tpu_custom_call.1} parent=1 // pred_check_branch
      %33 = sbr.rel (0) target = $region9
    $region8: #{tpu_custom_call.1} parent=1 // pred_region
      _
    $region9: #{tpu_custom_call.1} parent=1 // pred_fallthru
      _
    // Predicated region
    $region10: #{tpu_custom_call.1} parent=1 // pred_check
      _
    $region11: #{tpu_custom_call.1} parent=1 // pred_check_branch
      %35 = sbr.rel (0) target = $region13
    $region12: #{tpu_custom_call.1} parent=1 // pred_region
      _
    $region13: #{tpu_custom_call.1} parent=1 // pred_fallthru
      _
    // Predicated region
    $region14: #{tpu_custom_call.1} parent=1 // pred_check
      _
    $region15: #{tpu_custom_call.1} parent=1 // pred_check_branch
      %37 = sbr.rel (0) target = $region17
    $region16: #{tpu_custom_call.1} parent=1 // pred_region
      _
    $region17: #{tpu_custom_call.1} parent=1 // pred_fallthru
      _
    // Predicated region
    $region18: #{tpu_custom_call.1} parent=1 // pred_check
      _
    $region19: #{tpu_custom_call.1} parent=1 // pred_check_branch
      %39 = sbr.rel (0) target = $region21
    $region20: #{tpu_custom_call.1} parent=1 // pred_region
      _
    $region21: #{tpu_custom_call.1} parent=1 // pred_fallthru
      _
    // Predicated region
    $region22: #{tpu_custom_call.1} parent=1 // pred_check
      _
    $region23: #{tpu_custom_call.1} parent=1 // pred_check_branch
      %41 = sbr.rel (0) target = $region25
    $region24: #{tpu_custom_call.1} parent=1 // pred_region
      _
    $region25: #{tpu_custom_call.1} parent=1 // pred_fallthru
      _
    // Predicated region
    $region26: #{tpu_custom_call.1} parent=1 // pred_check
      _
    $region27: #{tpu_custom_call.1} parent=1 // pred_check_branch
      %43 = sbr.rel (0) target = $region29
    $region28: #{tpu_custom_call.1} parent=1 // pred_region
      %s45 = ssub.s32 7680, 7680
      %46 = vsyncadd [#allocation7], %s45
      %s47 = sshll.u32 [#allocation6], 4
      %s48 = int_to_ptr.vmem [resolvable:$true] %s47
      %53 = dma.hbm_to_vmem [thread:$0]  %s6, 7680, %s48, [#allocation7], 384, 384, 24
    $region29: #{tpu_custom_call.1} parent=1 // pred_fallthru
      _
    // Predicated region
    $region30: #{tpu_custom_call.1} parent=1 // pred_check
      _
    $region31: #{tpu_custom_call.1} parent=1 // pred_check_branch
      %55 = sbr.rel (0) target = $region33
    $region32: #{tpu_custom_call.1} parent=1 // pred_region
      _
    $region33: #{tpu_custom_call.1} parent=1 // pred_fallthru
      _
    // Predicated region
    $region34: #{tpu_custom_call.1} parent=1 // pred_check
      _
    $region35: #{tpu_custom_call.1} parent=1 // pred_check_branch
      %57 = sbr.rel (0) target = $region37
    $region36: #{tpu_custom_call.1} parent=1 // pred_region
      %58 = dma.done [#allocation4], 640
    $region37: #{tpu_custom_call.1} parent=1 // pred_fallthru
      _
    // Predicated region
    $region38: #{tpu_custom_call.1} parent=1 // pred_check
      _
    $region39: #{tpu_custom_call.1} parent=1 // pred_check_branch
      %60 = sbr.rel (0) target = $region41
    $region40: #{tpu_custom_call.1} parent=1 // pred_region
      %61 = dma.done [#allocation7], 7680
    $region41: #{tpu_custom_call.1} parent=1 // pred_fallthru
      _
    %62 = vst [vmem:[#allocation2] sm:$0xff] 0.0
    %63 = vst [vmem:[#allocation2 + $0x20] sm:$0xff] 0.0
    %v64 = vld [vmem:[%s1] sm:$0x7]
    %v65 = vld [vmem:[%s2] sm:$0xff]
    %v66 = vld [vmem:[%s3] sm:$0xff]
    %v67 = vld [vmem:[%s4] sm:$0xff]
    %v68 = vld [vmem:[%s4 + $0x8] sm:$0xff]
    %v69 = vld [vmem:[%s5] sm:$0xff]
    %v70 = vld [vmem:[%s5 + $0x8] sm:$0xff]
    %v71 = vld [vmem:[%s7] sm:$0x1]
    %v72 = vld [vmem:[#allocation3] sm:$0xff]
    %v73 = vld [vmem:[#allocation3 + $0x8] sm:$0xff]
    %v74 = vld [vmem:[#allocation3 + $0x10] sm:$0xf]
    %v77 = vcombine.high %v72, %v72
    %v78 = vcombine.high %v73, %v73
    %v81 = vcombine.low %v72, %v72
    %v82 = vcombine.low %v73, %v73
    %83 = vrot.lane.b32.xlu0 %v81, 127
    %v84 = vpop.permute.xlu0 %83
    %85 = vrot.lane.b32.xlu0 %v72, 127
    %v86 = vpop.permute.xlu0 %85
    %87 = vrot.lane.b32.xlu0 %v82, 127
    %v88 = vpop.permute.xlu0 %87
    %89 = vrot.lane.b32.xlu0 %v73, 127
    %v90 = vpop.permute.xlu0 %89
    %vm91 = vcmask 1039360
    %v92 = vsel %vm91, %v84, %v86
    %v93 = vsel %vm91, %v86, %v88
    %v94 = vsel %vm91, %v88, %v90
    %99 = vrot.lane.b32.xlu0 %v72, 126
    %v100 = vpop.permute.xlu0 %99
    %101 = vrot.lane.b32.xlu0 %v77, 126
    %v102 = vpop.permute.xlu0 %101
    %103 = vrot.lane.b32.xlu0 %v73, 126
    %v104 = vpop.permute.xlu0 %103
    %105 = vrot.lane.b32.xlu0 %v78, 126
    %v106 = vpop.permute.xlu0 %105
    %vm107 = vcmask 1031168
    %v108 = vsel %vm107, %v100, %v102
    %v109 = vsel %vm107, %v102, %v104
    %v110 = vsel %vm107, %v104, %v106
    %115 = vrot.lane.b32.xlu0 %v81, 110
    %v116 = vpop.permute.xlu0 %115
    %117 = vrot.lane.b32.xlu0 %v72, 110
    %v118 = vpop.permute.xlu0 %117
    %119 = vrot.lane.b32.xlu0 %v82, 110
    %v120 = vpop.permute.xlu0 %119
    %121 = vrot.lane.b32.xlu0 %v73, 110
    %v122 = vpop.permute.xlu0 %121
    %vm123 = vcmask 900096
    %v124 = vsel %vm123, %v116, %v118
    %v125 = vsel %vm123, %v118, %v120
    %v126 = vsel %vm123, %v120, %v122
    %131 = vrot.lane.b32.xlu0 %v77, 109
    %v132 = vpop.permute.xlu0 %131
    %133 = vrot.lane.b32.xlu0 %v73, 109
    %v134 = vpop.permute.xlu0 %133
    %135 = vrot.lane.b32.xlu0 %v78, 109
    %v136 = vpop.permute.xlu0 %135
    %vm137 = vcmask 891904
    %v138 = vsel %vm137, %v132, %v134
    %v139 = vsel %vm137, %v134, %v136
    %v145 = vcombine.low %v74, %v74
    %146 = vrot.lane.b32.xlu0 %v72, 108
    %v147 = vpop.permute.xlu0 %146
    %148 = vrot.lane.b32.xlu0 %v82, 108
    %v149 = vpop.permute.xlu0 %148
    %150 = vrot.lane.b32.xlu0 %v73, 108
    %v151 = vpop.permute.xlu0 %150
    %152 = vrot.lane.b32.xlu0 %v145, 108
    %v153 = vpop.permute.xlu0 %152
    %vm154 = vcmask 883712
    %v155 = vsel %vm154, %v147, %v149
    %v156 = vsel %vm154, %v149, %v151
    %v157 = vsel %vm154, %v151, %v153
    %162 = vrot.lane.b32.xlu0 %v77, 92
    %v163 = vpop.permute.xlu0 %162
    %164 = vrot.lane.b32.xlu0 %v73, 92
    %v165 = vpop.permute.xlu0 %164
    %166 = vrot.lane.b32.xlu0 %v78, 92
    %v167 = vpop.permute.xlu0 %166
    %168 = vrot.lane.b32.xlu0 %v74, 92
    %v169 = vpop.permute.xlu0 %168
    %vm170 = vcmask 752640
    %v171 = vsel %vm170, %v163, %v165
    %v172 = vsel %vm170, %v165, %v167
    %v173 = vsel %vm170, %v167, %v169
    %178 = vrot.lane.b32.xlu0 %v72, 91
    %v179 = vpop.permute.xlu0 %178
    %180 = vrot.lane.b32.xlu0 %v82, 91
    %v181 = vpop.permute.xlu0 %180
    %182 = vrot.lane.b32.xlu0 %v73, 91
    %v183 = vpop.permute.xlu0 %182
    %184 = vrot.lane.b32.xlu0 %v145, 91
    %v185 = vpop.permute.xlu0 %184
    %vm186 = vcmask 744448
    %v187 = vsel %vm186, %v179, %v181
    %v188 = vsel %vm186, %v181, %v183
    %v189 = vsel %vm186, %v183, %v185
    %194 = vrot.lane.b32.xlu0 %v77, 90
    %v195 = vpop.permute.xlu0 %194
    %196 = vrot.lane.b32.xlu0 %v73, 90
    %v197 = vpop.permute.xlu0 %196
    %198 = vrot.lane.b32.xlu0 %v78, 90
    %v199 = vpop.permute.xlu0 %198
    %200 = vrot.lane.b32.xlu0 %v74, 90
    %v201 = vpop.permute.xlu0 %200
    %vm202 = vcmask 736256
    %v203 = vsel %vm202, %v195, %v197
    %v204 = vsel %vm202, %v197, %v199
    %v205 = vsel %vm202, %v199, %v201
    %vm206 = vcmask 1043456
    %v207 = vsel %vm206, %v72, %v92
    %v208 = vsel %vm206, %v77, %v93
    %v209 = vsel %vm206, %v73, %v94
    %v210 = vsel %vm206, %v78, %v90
    %v211 = vsel %vm206, %v108, %v124
    %v212 = vsel %vm206, %v109, %v125
    %v213 = vsel %vm206, %v110, %v126
    %v214 = vsel %vm206, %v106, %v122
    %v215 = vsel %vm206, %v132, %v147
    %v216 = vsel %vm206, %v138, %v155
    %v217 = vsel %vm206, %v139, %v156
    %v218 = vsel %vm206, %v136, %v157
    %v219 = vsel %vm206, %v163, %v179
    %v220 = vsel %vm206, %v171, %v187
    %v221 = vsel %vm206, %v172, %v188
    %v222 = vsel %vm206, %v173, %v189
    %224 = vset.pattern.permute.xlu0 0
    %225 = vperm.xlu0 %224, %v66
    %v226 = vpop.permute.xlu0 %225
    %244 = vrot.lane.b32.xlu0 %v207, 19
    %v245 = vpop.permute.xlu0 %244
    %246 = vrot.lane.b32.xlu0 %v208, 19
    %v247 = vpop.permute.xlu0 %246
    %248 = vrot.lane.b32.xlu0 %v209, 19
    %v249 = vpop.permute.xlu0 %248
    %250 = vrot.lane.b32.xlu0 %v210, 19
    %v251 = vpop.permute.xlu0 %250
    %252 = vrot.lane.b32.xlu0 %v211, 19
    %v253 = vpop.permute.xlu0 %252
    %254 = vrot.lane.b32.xlu0 %v212, 19
    %v255 = vpop.permute.xlu0 %254
    %256 = vrot.lane.b32.xlu0 %v213, 19
    %v257 = vpop.permute.xlu0 %256
    %258 = vrot.lane.b32.xlu0 %v214, 19
    %v259 = vpop.permute.xlu0 %258
    %260 = vrot.lane.b32.xlu0 %v215, 19
    %v261 = vpop.permute.xlu0 %260
    %262 = vrot.lane.b32.xlu0 %v216, 19
    %v263 = vpop.permute.xlu0 %262
    %264 = vrot.lane.b32.xlu0 %v217, 19
    %v265 = vpop.permute.xlu0 %264
    %266 = vrot.lane.b32.xlu0 %v218, 19
    %v267 = vpop.permute.xlu0 %266
    %268 = vrot.lane.b32.xlu0 %v219, 19
    %v269 = vpop.permute.xlu0 %268
    %270 = vrot.lane.b32.xlu0 %v220, 19
    %v271 = vpop.permute.xlu0 %270
    %272 = vrot.lane.b32.xlu0 %v221, 19
    %v273 = vpop.permute.xlu0 %272
    %274 = vrot.lane.b32.xlu0 %v222, 19
    %v275 = vpop.permute.xlu0 %274
    %276 = vrot.lane.b32.xlu0 %v195, 19
    %v277 = vpop.permute.xlu0 %276
    %278 = vrot.lane.b32.xlu0 %v203, 19
    %v279 = vpop.permute.xlu0 %278
    %280 = vrot.lane.b32.xlu0 %v204, 19
    %v281 = vpop.permute.xlu0 %280
    %282 = vrot.lane.b32.xlu0 %v205, 19
    %v283 = vpop.permute.xlu0 %282
    %vm284 = vcmask 154624
    %v285 = vsel %vm284, %v245, %v247
    %v286 = vsel %vm284, %v247, %v249
    %v287 = vsel %vm284, %v249, %v251
    %v288 = vsel %vm284, %v253, %v255
    %v289 = vsel %vm284, %v255, %v257
    %v290 = vsel %vm284, %v257, %v259
    %v291 = vsel %vm284, %v261, %v263
    %v292 = vsel %vm284, %v263, %v265
    %v293 = vsel %vm284, %v265, %v267
    %v294 = vsel %vm284, %v269, %v271
    %v295 = vsel %vm284, %v271, %v273
    %v296 = vsel %vm284, %v273, %v275
    %v297 = vsel %vm284, %v277, %v279
    %v298 = vsel %vm284, %v279, %v281
    %v299 = vsel %vm284, %v281, %v283
    %vm312 = vcmask 293888
    %v314 = vsel %vm312, %v65, 0
    %v316 = vsel %vm206, %v297, 0
    %v318 = vsel %vm206, %v298, 0
    %v320 = vsel %vm206, %v299, 0
    %322 = vmatprep.subr.mxu0 %v286
    %323 = vmatpush1.msra.mxu0 %v285
    %324 = vmatprep.subr.mxu0 %v289
    %325 = vmatpush1.msra.mxu0 %v288
    %326 = vmatprep.subr.mxu0 %v292
    %327 = vmatpush1.msra.mxu0 %v291
    %328 = vmatprep.subr.mxu0 %v295
    %329 = vmatpush1.msra.mxu0 %v294
    %330 = vmatprep.subr.mxu0 %v318
    %331 = vmatpush1.msra.mxu0 %v316
    %332 = vmatprep.subr.mxu0 0.0
    %333 = vmatpush1.msra.mxu0 0.0
    %334 = vmatprep.subr.mxu0 0.0
    %335 = vmatpush1.msra.mxu0 0.0
    %336 = vmatprep.subr.mxu0 0.0
    %337 = vmatpush1.msra.mxu0 0.0
    %338 = vmatprep.subr.mxu0 0.0
    %339 = vmatpush1.msra.mxu0 0.0
    %340 = vmatprep.subr.mxu0 0.0
    %341 = vmatpush1.msra.mxu0 0.0
    %342 = vmatprep.subr.mxu0 0.0
    %343 = vmatpush1.msra.mxu0 0.0
    %344 = vmatprep.subr.mxu0 0.0
    %345 = vmatpush1.msra.mxu0 0.0
    %346 = vmatprep.subr.mxu0 0.0
    %347 = vmatpush1.msra.mxu0 0.0
    %348 = vmatprep.subr.mxu0 0.0
    %349 = vmatpush1.msra.mxu0 0.0
    %350 = vmatprep.subr.mxu0 0.0
    %351 = vmatpush1.msra.mxu0 0.0
    %352 = vmatprep.subr.mxu0 0.0
    %353 = vmatpush1.msra.mxu0 0.0
    %354 = vmatprep.subr.mxu0 0.0
    %355 = vmatpush1.msra.mxu0 0.0
    %356 = vmatprep.subr.mxu0 0.0
    %357 = vmatpush1.msra.mxu0 0.0
    %358 = vmatprep.subr.mxu0 0.0
    %359 = vmatpush1.msra.mxu0 0.0
    %360 = vmatprep.subr.mxu0 0.0
    %361 = vmatpush1.msra.mxu0 0.0
    %362 = vmatprep.subr.mxu0 0.0
    %363 = vmatpush1.msra.mxu0 0.0
    %364 = vmatprep.subr.mxu0 0.0
    %365 = vmatpush1.msra.mxu0 0.0
    %366 = vmatprep.subr.mxu0 0.0
    %367 = vmatpush1.msra.mxu0 0.0
    %368 = vmatprep.subr.mxu0 0.0
    %369 = vmatpush1.msra.mxu0 0.0
    %370 = vmatprep.subr.mxu0 0.0
    %371 = vmatpush1.msra.mxu0 0.0
    %372 = vmatprep.subr.mxu0 0.0
    %373 = vmatpush1.msra.mxu0 0.0
    %374 = vmatprep.subr.mxu0 0.0
    %375 = vmatpush1.msra.mxu0 0.0
    %376 = vmatprep.subr.mxu0 0.0
    %377 = vmatpush1.msra.mxu0 0.0
    %378 = vmatprep.subr.mxu0 0.0
    %379 = vmatpush1.msra.mxu0 0.0
    %380 = vmatprep.subr.mxu0 0.0
    %381 = vmatpush1.msra.mxu0 0.0
    %382 = vmatprep.subr.mxu0 0.0
    %383 = vmatpush1.msra.mxu0 0.0
    %384 = vmatprep.subr.mxu0 0.0
    %385 = vmatpush1.msra.mxu0 0.0
    %386 = vmatprep.mubr.f32.mxu0 0.0
    %387 = vmatmul.mubr.f32.gmra.mrb[0].mxu0 %v314
    %v388 = vpop.f32.mrb[0].mxu0
    %v389 = vadd.f32 %v226, %v388
    %v390 = vpop.f32.mrb[0].mxu0
    %v391 = vadd.f32 %v226, %v390
    %392 = vdwg.mxu0
    %393 = vmatprep.subr.mxu0 0.0
    %394 = vmatpush1.msra.mxu0 %v287
    %395 = vmatprep.subr.mxu0 0.0
    %396 = vmatpush1.msra.mxu0 %v290
    %397 = vmatprep.subr.mxu0 0.0
    %398 = vmatpush1.msra.mxu0 %v293
    %399 = vmatprep.subr.mxu0 0.0
    %400 = vmatpush1.msra.mxu0 %v296
    %401 = vmatprep.subr.mxu0 0.0
    %402 = vmatpush1.msra.mxu0 %v320
    %403 = vmatprep.subr.mxu0 0.0
    %404 = vmatpush1.msra.mxu0 0.0
    %405 = vmatprep.subr.mxu0 0.0
    %406 = vmatpush1.msra.mxu0 0.0
    %407 = vmatprep.subr.mxu0 0.0
    %408 = vmatpush1.msra.mxu0 0.0
    %409 = vmatprep.subr.mxu0 0.0
    %410 = vmatpush1.msra.mxu0 0.0
    %411 = vmatprep.subr.mxu0 0.0
    %412 = vmatpush1.msra.mxu0 0.0
    %413 = vmatprep.subr.mxu0 0.0
    %414 = vmatpush1.msra.mxu0 0.0
    %415 = vmatprep.subr.mxu0 0.0
    %416 = vmatpush1.msra.mxu0 0.0
    %417 = vmatprep.subr.mxu0 0.0
    %418 = vmatpush1.msra.mxu0 0.0
    %419 = vmatprep.subr.mxu0 0.0
    %420 = vmatpush1.msra.mxu0 0.0
    %421 = vmatprep.subr.mxu0 0.0
    %422 = vmatpush1.msra.mxu0 0.0
    %423 = vmatprep.subr.mxu0 0.0
    %424 = vmatpush1.msra.mxu0 0.0
    %425 = vmatprep.subr.mxu0 0.0
    %426 = vmatpush1.msra.mxu0 0.0
    %427 = vmatprep.subr.mxu0 0.0
    %428 = vmatpush1.msra.mxu0 0.0
    %429 = vmatprep.subr.mxu0 0.0
    %430 = vmatpush1.msra.mxu0 0.0
    %431 = vmatprep.subr.mxu0 0.0
    %432 = vmatpush1.msra.mxu0 0.0
    %433 = vmatprep.subr.mxu0 0.0
    %434 = vmatpush1.msra.mxu0 0.0
    %435 = vmatprep.subr.mxu0 0.0
    %436 = vmatpush1.msra.mxu0 0.0
    %437 = vmatprep.subr.mxu0 0.0
    %438 = vmatpush1.msra.mxu0 0.0
    %439 = vmatprep.subr.mxu0 0.0
    %440 = vmatpush1.msra.mxu0 0.0
    %441 = vmatprep.subr.mxu0 0.0
    %442 = vmatpush1.msra.mxu0 0.0
    %443 = vmatprep.subr.mxu0 0.0
    %444 = vmatpush1.msra.mxu0 0.0
    %445 = vmatprep.subr.mxu0 0.0
    %446 = vmatpush1.msra.mxu0 0.0
    %447 = vmatprep.subr.mxu0 0.0
    %448 = vmatpush1.msra.mxu0 0.0
    %449 = vmatprep.subr.mxu0 0.0
    %450 = vmatpush1.msra.mxu0 0.0
    %451 = vmatprep.subr.mxu0 0.0
    %452 = vmatpush1.msra.mxu0 0.0
    %453 = vmatprep.subr.mxu0 0.0
    %454 = vmatpush1.msra.mxu0 0.0
    %455 = vmatprep.subr.mxu0 0.0
    %456 = vmatpush1.msra.mxu0 0.0
    %457 = vmatprep.mubr.f32.mxu0 0.0
    %458 = vmatmul.mubr.f32.gmra.mrb[0].mxu0 %v314
    %v459 = vpop.f32.mrb[0].mxu0
    %v460 = vadd.f32 %v226, %v459
    %v461 = vpop.f32.mrb[0].mxu0
    %462 = vdwg.mxu0
    %v463 = vmax.f32 %v389, 0.0
    %v464 = vmax.f32 %v391, 0.0
    %v465 = vmax.f32 %v460, 0.0
    %v467 = vlaneseq
    %v468 = vshrl.u32 %v467, 7
    %v469 = vsub.s32 0, %v468
    %v470 = vrot.slane %v64, %v469
    %v471 = vlaneseq
    %v472 = vshrl.u32 %v471, 7
    %v473 = vsub.s32 1, %v472
    %v474 = vrot.slane %v64, %v473
    %v475 = vlaneseq
    %v476 = vshrl.u32 %v475, 7
    %v477 = vsub.s32 2, %v476
    %v478 = vrot.slane %v64, %v477
    %v482 = vmul.f32 %v463, %v470
    %v483 = vmul.f32 %v464, %v474
    %v484 = vmul.f32 %v465, %v478
    %485 = vst [vmem:[#allocation8] sm:$0xff] %v482
    %486 = vst [vmem:[#allocation8 + $0x8] sm:$0xff] %v483
    %487 = vst [vmem:[#allocation8 + $0x10] sm:$0xff] %v484
    %488 = vst [vmem:[#allocation2 + $0x8] sm:$0xff] %v482
    %489 = vst [vmem:[#allocation2 + $0x10] sm:$0xff] %v483
    %490 = vst [vmem:[#allocation2 + $0x18] sm:$0xff] %v484
    %v491 = vld [vmem:[#allocation2] sm:$0xff]
    %v492 = vld [vmem:[#allocation2 + $0x8] sm:$0xff]
    %v493 = vld [vmem:[#allocation2 + $0x10] sm:$0xff]
    %v494 = vld [vmem:[#allocation2 + $0x18] sm:$0xff]
    %v495 = vld [vmem:[#allocation2 + $0x8] sm:$0xff]
    %v496 = vld [vmem:[#allocation2 + $0x10] sm:$0xff]
    %v497 = vld [vmem:[#allocation2 + $0x18] sm:$0xff]
    %v498 = vld [vmem:[#allocation2 + $0x20] sm:$0xff]
    %503 = vrot.lane.b32.xlu0 %v491, 127
    %v504 = vpop.permute.xlu0 %503
    %505 = vrot.lane.b32.xlu0 %v492, 127
    %v506 = vpop.permute.xlu0 %505
    %507 = vrot.lane.b32.xlu0 %v493, 127
    %v508 = vpop.permute.xlu0 %507
    %509 = vrot.lane.b32.xlu0 %v494, 127
    %v510 = vpop.permute.xlu0 %509
    %v511 = vsel %vm91, %v504, %v506
    %v512 = vsel %vm91, %v506, %v508
    %v513 = vsel %vm91, %v508, %v510
    %514 = vrot.lane.b32.xlu0 %v491, 126
    %v515 = vpop.permute.xlu0 %514
    %516 = vrot.lane.b32.xlu0 %v492, 126
    %v517 = vpop.permute.xlu0 %516
    %518 = vrot.lane.b32.xlu0 %v493, 126
    %v519 = vpop.permute.xlu0 %518
    %520 = vrot.lane.b32.xlu0 %v494, 126
    %v521 = vpop.permute.xlu0 %520
    %v522 = vsel %vm107, %v515, %v517
    %v523 = vsel %vm107, %v517, %v519
    %v524 = vsel %vm107, %v519, %v521
    %525 = vrot.lane.b32.xlu0 %v491, 110
    %v526 = vpop.permute.xlu0 %525
    %527 = vrot.lane.b32.xlu0 %v492, 110
    %v528 = vpop.permute.xlu0 %527
    %529 = vrot.lane.b32.xlu0 %v493, 110
    %v530 = vpop.permute.xlu0 %529
    %531 = vrot.lane.b32.xlu0 %v494, 110
    %v532 = vpop.permute.xlu0 %531
    %v533 = vsel %vm123, %v526, %v528
    %v534 = vsel %vm123, %v528, %v530
    %v535 = vsel %vm123, %v530, %v532
    %536 = vrot.lane.b32.xlu0 %v492, 109
    %v537 = vpop.permute.xlu0 %536
    %538 = vrot.lane.b32.xlu0 %v493, 109
    %v539 = vpop.permute.xlu0 %538
    %540 = vrot.lane.b32.xlu0 %v494, 109
    %v541 = vpop.permute.xlu0 %540
    %v542 = vsel %vm137, %v537, %v539
    %v543 = vsel %vm137, %v539, %v541
    %548 = vrot.lane.b32.xlu0 %v495, 108
    %v549 = vpop.permute.xlu0 %548
    %550 = vrot.lane.b32.xlu0 %v496, 108
    %v551 = vpop.permute.xlu0 %550
    %552 = vrot.lane.b32.xlu0 %v497, 108
    %v553 = vpop.permute.xlu0 %552
    %554 = vrot.lane.b32.xlu0 %v498, 108
    %v555 = vpop.permute.xlu0 %554
    %v556 = vsel %vm154, %v549, %v551
    %v557 = vsel %vm154, %v551, %v553
    %v558 = vsel %vm154, %v553, %v555
    %559 = vrot.lane.b32.xlu0 %v495, 92
    %v560 = vpop.permute.xlu0 %559
    %561 = vrot.lane.b32.xlu0 %v496, 92
    %v562 = vpop.permute.xlu0 %561
    %563 = vrot.lane.b32.xlu0 %v497, 92
    %v564 = vpop.permute.xlu0 %563
    %565 = vrot.lane.b32.xlu0 %v498, 92
    %v566 = vpop.permute.xlu0 %565
    %v567 = vsel %vm170, %v560, %v562
    %v568 = vsel %vm170, %v562, %v564
    %v569 = vsel %vm170, %v564, %v566
    %570 = vrot.lane.b32.xlu0 %v495, 91
    %v571 = vpop.permute.xlu0 %570
    %572 = vrot.lane.b32.xlu0 %v496, 91
    %v573 = vpop.permute.xlu0 %572
    %574 = vrot.lane.b32.xlu0 %v497, 91
    %v575 = vpop.permute.xlu0 %574
    %576 = vrot.lane.b32.xlu0 %v498, 91
    %v577 = vpop.permute.xlu0 %576
    %v578 = vsel %vm186, %v571, %v573
    %v579 = vsel %vm186, %v573, %v575
    %v580 = vsel %vm186, %v575, %v577
    %581 = vrot.lane.b32.xlu0 %v495, 90
    %v582 = vpop.permute.xlu0 %581
    %583 = vrot.lane.b32.xlu0 %v496, 90
    %v584 = vpop.permute.xlu0 %583
    %585 = vrot.lane.b32.xlu0 %v497, 90
    %v586 = vpop.permute.xlu0 %585
    %587 = vrot.lane.b32.xlu0 %v498, 90
    %v588 = vpop.permute.xlu0 %587
    %v589 = vsel %vm202, %v582, %v584
    %v590 = vsel %vm202, %v584, %v586
    %v591 = vsel %vm202, %v586, %v588
    %593 = vset.pattern.permute.xlu0 0
    %594 = vperm.xlu0 %593, %v69
    %v595 = vpop.permute.xlu0 %594
    %598 = vset.pattern.permute.xlu0 0
    %599 = vperm.xlu0 %598, %v70
    %v600 = vpop.permute.xlu0 %599
    %602 = vrot.lane.b32.xlu0 %v491, 19
    %v603 = vpop.permute.xlu0 %602
    %604 = vrot.lane.b32.xlu0 %v492, 19
    %v605 = vpop.permute.xlu0 %604
    %606 = vrot.lane.b32.xlu0 %v493, 19
    %v607 = vpop.permute.xlu0 %606
    %608 = vrot.lane.b32.xlu0 %v494, 19
    %v609 = vpop.permute.xlu0 %608
    %610 = vrot.lane.b32.xlu0 %v511, 19
    %v611 = vpop.permute.xlu0 %610
    %612 = vrot.lane.b32.xlu0 %v512, 19
    %v613 = vpop.permute.xlu0 %612
    %614 = vrot.lane.b32.xlu0 %v513, 19
    %v615 = vpop.permute.xlu0 %614
    %616 = vrot.lane.b32.xlu0 %v510, 19
    %v617 = vpop.permute.xlu0 %616
    %618 = vrot.lane.b32.xlu0 %v522, 19
    %v619 = vpop.permute.xlu0 %618
    %620 = vrot.lane.b32.xlu0 %v523, 19
    %v621 = vpop.permute.xlu0 %620
    %622 = vrot.lane.b32.xlu0 %v524, 19
    %v623 = vpop.permute.xlu0 %622
    %624 = vrot.lane.b32.xlu0 %v521, 19
    %v625 = vpop.permute.xlu0 %624
    %626 = vrot.lane.b32.xlu0 %v533, 19
    %v627 = vpop.permute.xlu0 %626
    %628 = vrot.lane.b32.xlu0 %v534, 19
    %v629 = vpop.permute.xlu0 %628
    %630 = vrot.lane.b32.xlu0 %v535, 19
    %v631 = vpop.permute.xlu0 %630
    %632 = vrot.lane.b32.xlu0 %v532, 19
    %v633 = vpop.permute.xlu0 %632
    %634 = vrot.lane.b32.xlu0 %v537, 19
    %v635 = vpop.permute.xlu0 %634
    %636 = vrot.lane.b32.xlu0 %v542, 19
    %v637 = vpop.permute.xlu0 %636
    %638 = vrot.lane.b32.xlu0 %v543, 19
    %v639 = vpop.permute.xlu0 %638
    %640 = vrot.lane.b32.xlu0 %v541, 19
    %v641 = vpop.permute.xlu0 %640
    %642 = vrot.lane.b32.xlu0 %v549, 19
    %v643 = vpop.permute.xlu0 %642
    %644 = vrot.lane.b32.xlu0 %v556, 19
    %v645 = vpop.permute.xlu0 %644
    %646 = vrot.lane.b32.xlu0 %v557, 19
    %v647 = vpop.permute.xlu0 %646
    %648 = vrot.lane.b32.xlu0 %v558, 19
    %v649 = vpop.permute.xlu0 %648
    %650 = vrot.lane.b32.xlu0 %v560, 19
    %v651 = vpop.permute.xlu0 %650
    %652 = vrot.lane.b32.xlu0 %v567, 19
    %v653 = vpop.permute.xlu0 %652
    %654 = vrot.lane.b32.xlu0 %v568, 19
    %v655 = vpop.permute.xlu0 %654
    %656 = vrot.lane.b32.xlu0 %v569, 19
    %v657 = vpop.permute.xlu0 %656
    %658 = vrot.lane.b32.xlu0 %v571, 19
    %v659 = vpop.permute.xlu0 %658
    %660 = vrot.lane.b32.xlu0 %v578, 19
    %v661 = vpop.permute.xlu0 %660
    %662 = vrot.lane.b32.xlu0 %v579, 19
    %v663 = vpop.permute.xlu0 %662
    %664 = vrot.lane.b32.xlu0 %v580, 19
    %v665 = vpop.permute.xlu0 %664
    %666 = vrot.lane.b32.xlu0 %v582, 19
    %v667 = vpop.permute.xlu0 %666
    %668 = vrot.lane.b32.xlu0 %v589, 19
    %v669 = vpop.permute.xlu0 %668
    %670 = vrot.lane.b32.xlu0 %v590, 19
    %v671 = vpop.permute.xlu0 %670
    %672 = vrot.lane.b32.xlu0 %v591, 19
    %v673 = vpop.permute.xlu0 %672
    %v674 = vsel %vm284, %v603, %v605
    %v675 = vsel %vm284, %v605, %v607
    %v676 = vsel %vm284, %v607, %v609
    %v677 = vsel %vm284, %v611, %v613
    %v678 = vsel %vm284, %v613, %v615
    %v679 = vsel %vm284, %v615, %v617
    %v680 = vsel %vm284, %v619, %v621
    %v681 = vsel %vm284, %v621, %v623
    %v682 = vsel %vm284, %v623, %v625
    %v683 = vsel %vm284, %v627, %v629
    %v684 = vsel %vm284, %v629, %v631
    %v685 = vsel %vm284, %v631, %v633
    %v686 = vsel %vm284, %v635, %v637
    %v687 = vsel %vm284, %v637, %v639
    %v688 = vsel %vm284, %v639, %v641
    %v689 = vsel %vm284, %v643, %v645
    %v690 = vsel %vm284, %v645, %v647
    %v691 = vsel %vm284, %v647, %v649
    %v692 = vsel %vm284, %v651, %v653
    %v693 = vsel %vm284, %v653, %v655
    %v694 = vsel %vm284, %v655, %v657
    %v695 = vsel %vm284, %v659, %v661
    %v696 = vsel %vm284, %v661, %v663
    %v697 = vsel %vm284, %v663, %v665
    %v698 = vsel %vm284, %v667, %v669
    %v699 = vsel %vm284, %v669, %v671
    %v700 = vsel %vm284, %v671, %v673
    %vm728 = vcmask 588800
    %v730 = vsel %vm728, %v67, 0
    %v733 = vsel %vm728, %v68, 0
    %735 = vmatprep.subr.mxu0 %v675
    %736 = vmatpush1.msra.mxu0 %v674
    %737 = vmatprep.subr.mxu0 %v678
    %738 = vmatpush1.msra.mxu0 %v677
    %739 = vmatprep.subr.mxu0 %v681
    %740 = vmatpush1.msra.mxu0 %v680
    %741 = vmatprep.subr.mxu0 %v684
    %742 = vmatpush1.msra.mxu0 %v683
    %743 = vmatprep.subr.mxu0 %v687
    %744 = vmatpush1.msra.mxu0 %v686
    %745 = vmatprep.subr.mxu0 %v690
    %746 = vmatpush1.msra.mxu0 %v689
    %747 = vmatprep.subr.mxu0 %v693
    %748 = vmatpush1.msra.mxu0 %v692
    %749 = vmatprep.subr.mxu0 %v696
    %750 = vmatpush1.msra.mxu0 %v695
    %751 = vmatprep.subr.mxu0 %v699
    %752 = vmatpush1.msra.mxu0 %v698
    %753 = vmatprep.subr.mxu0 0.0
    %754 = vmatpush1.msra.mxu0 0.0
    %755 = vmatprep.subr.mxu0 0.0
    %756 = vmatpush1.msra.mxu0 0.0
    %757 = vmatprep.subr.mxu0 0.0
    %758 = vmatpush1.msra.mxu0 0.0
    %759 = vmatprep.subr.mxu0 0.0
    %760 = vmatpush1.msra.mxu0 0.0
    %761 = vmatprep.subr.mxu0 0.0
    %762 = vmatpush1.msra.mxu0 0.0
    %763 = vmatprep.subr.mxu0 0.0
    %764 = vmatpush1.msra.mxu0 0.0
    %765 = vmatprep.subr.mxu0 0.0
    %766 = vmatpush1.msra.mxu0 0.0
    %767 = vmatprep.subr.mxu0 0.0
    %768 = vmatpush1.msra.mxu0 0.0
    %769 = vmatprep.subr.mxu0 0.0
    %770 = vmatpush1.msra.mxu0 0.0
    %771 = vmatprep.subr.mxu0 0.0
    %772 = vmatpush1.msra.mxu0 0.0
    %773 = vmatprep.subr.mxu0 0.0
    %774 = vmatpush1.msra.mxu0 0.0
    %775 = vmatprep.subr.mxu0 0.0
    %776 = vmatpush1.msra.mxu0 0.0
    %777 = vmatprep.subr.mxu0 0.0
    %778 = vmatpush1.msra.mxu0 0.0
    %779 = vmatprep.subr.mxu0 0.0
    %780 = vmatpush1.msra.mxu0 0.0
    %781 = vmatprep.subr.mxu0 0.0
    %782 = vmatpush1.msra.mxu0 0.0
    %783 = vmatprep.subr.mxu0 0.0
    %784 = vmatpush1.msra.mxu0 0.0
    %785 = vmatprep.subr.mxu0 0.0
    %786 = vmatpush1.msra.mxu0 0.0
    %787 = vmatprep.subr.mxu0 0.0
    %788 = vmatpush1.msra.mxu0 0.0
    %789 = vmatprep.subr.mxu0 0.0
    %790 = vmatpush1.msra.mxu0 0.0
    %791 = vmatprep.subr.mxu0 0.0
    %792 = vmatpush1.msra.mxu0 0.0
    %793 = vmatprep.subr.mxu0 0.0
    %794 = vmatpush1.msra.mxu0 0.0
    %795 = vmatprep.subr.mxu0 0.0
    %796 = vmatpush1.msra.mxu0 0.0
    %797 = vmatprep.subr.mxu0 0.0
    %798 = vmatpush1.msra.mxu0 0.0
    %799 = vmatprep.mubr.f32.mxu0 0.0
    %800 = vmatmul.mubr.f32.gmra.mrb[0].mxu0 %v730
    %v801 = vpop.f32.mrb[0].mxu0
    %v802 = vadd.f32 %v595, %v801
    %v803 = vpop.f32.mrb[0].mxu0
    %v804 = vadd.f32 %v595, %v803
    %805 = vmatprep.mubr.f32.mxu0 0.0
    %806 = vmatmul.mubr.f32.gmra.mrb[0].mxu0 %v733
    %v807 = vpop.f32.mrb[0].mxu0
    %v808 = vadd.f32 %v600, %v807
    %v809 = vpop.f32.mrb[0].mxu0
    %v810 = vadd.f32 %v600, %v809
    %811 = vdwg.mxu0
    %812 = vmatprep.subr.mxu0 0.0
    %813 = vmatpush1.msra.mxu0 %v676
    %814 = vmatprep.subr.mxu0 0.0
    %815 = vmatpush1.msra.mxu0 %v679
    %816 = vmatprep.subr.mxu0 0.0
    %817 = vmatpush1.msra.mxu0 %v682
    %818 = vmatprep.subr.mxu0 0.0
    %819 = vmatpush1.msra.mxu0 %v685
    %820 = vmatprep.subr.mxu0 0.0
    %821 = vmatpush1.msra.mxu0 %v688
    %822 = vmatprep.subr.mxu0 0.0
    %823 = vmatpush1.msra.mxu0 %v691
    %824 = vmatprep.subr.mxu0 0.0
    %825 = vmatpush1.msra.mxu0 %v694
    %826 = vmatprep.subr.mxu0 0.0
    %827 = vmatpush1.msra.mxu0 %v697
    %828 = vmatprep.subr.mxu0 0.0
    %829 = vmatpush1.msra.mxu0 %v700
    %830 = vmatprep.subr.mxu0 0.0
    %831 = vmatpush1.msra.mxu0 0.0
    %832 = vmatprep.subr.mxu0 0.0
    %833 = vmatpush1.msra.mxu0 0.0
    %834 = vmatprep.subr.mxu0 0.0
    %835 = vmatpush1.msra.mxu0 0.0
    %836 = vmatprep.subr.mxu0 0.0
    %837 = vmatpush1.msra.mxu0 0.0
    %838 = vmatprep.subr.mxu0 0.0
    %839 = vmatpush1.msra.mxu0 0.0
    %840 = vmatprep.subr.mxu0 0.0
    %841 = vmatpush1.msra.mxu0 0.0
    %842 = vmatprep.subr.mxu0 0.0
    %843 = vmatpush1.msra.mxu0 0.0
    %844 = vmatprep.subr.mxu0 0.0
    %845 = vmatpush1.msra.mxu0 0.0
    %846 = vmatprep.subr.mxu0 0.0
    %847 = vmatpush1.msra.mxu0 0.0
    %848 = vmatprep.subr.mxu0 0.0
    %849 = vmatpush1.msra.mxu0 0.0
    %850 = vmatprep.subr.mxu0 0.0
    %851 = vmatpush1.msra.mxu0 0.0
    %852 = vmatprep.subr.mxu0 0.0
    %853 = vmatpush1.msra.mxu0 0.0
    %854 = vmatprep.subr.mxu0 0.0
    %855 = vmatpush1.msra.mxu0 0.0
    %856 = vmatprep.subr.mxu0 0.0
    %857 = vmatpush1.msra.mxu0 0.0
    %858 = vmatprep.subr.mxu0 0.0
    %859 = vmatpush1.msra.mxu0 0.0
    %860 = vmatprep.subr.mxu0 0.0
    %861 = vmatpush1.msra.mxu0 0.0
    %862 = vmatprep.subr.mxu0 0.0
    %863 = vmatpush1.msra.mxu0 0.0
    %864 = vmatprep.subr.mxu0 0.0
    %865 = vmatpush1.msra.mxu0 0.0
    %866 = vmatprep.subr.mxu0 0.0
    %867 = vmatpush1.msra.mxu0 0.0
    %868 = vmatprep.subr.mxu0 0.0
    %869 = vmatpush1.msra.mxu0 0.0
    %870 = vmatprep.subr.mxu0 0.0
    %871 = vmatpush1.msra.mxu0 0.0
    %872 = vmatprep.subr.mxu0 0.0
    %873 = vmatpush1.msra.mxu0 0.0
    %874 = vmatprep.subr.mxu0 0.0
    %875 = vmatpush1.msra.mxu0 0.0
    %876 = vmatprep.mubr.f32.mxu0 0.0
    %877 = vmatmul.mubr.f32.gmra.mrb[0].mxu0 %v730
    %v878 = vpop.f32.mrb[0].mxu0
    %v879 = vadd.f32 %v595, %v878
    %v880 = vpop.f32.mrb[0].mxu0
    %881 = vmatprep.mubr.f32.mxu0 0.0
    %882 = vmatmul.mubr.f32.gmra.mrb[0].mxu0 %v733
    %v883 = vpop.f32.mrb[0].mxu0
    %v884 = vadd.f32 %v600, %v883
    %v885 = vpop.f32.mrb[0].mxu0
    %886 = vdwg.mxu0
    %v887 = vmax.f32 %v802, 0.0
    %v888 = vmax.f32 %v804, 0.0
    %v889 = vmax.f32 %v879, 0.0
    %v890 = vmax.f32 %v808, 0.0
    %v891 = vmax.f32 %v810, 0.0
    %v892 = vmax.f32 %v884, 0.0
    %893 = vst [vmem:[#allocation9] sm:$0xff] %v887
    %894 = vst [vmem:[#allocation9 + $0x8] sm:$0xff] %v888
    %895 = vst [vmem:[#allocation9 + $0x10] sm:$0xff] %v889
    %896 = vst [vmem:[#allocation9 + $0x18] sm:$0xff] %v890
    %897 = vst [vmem:[#allocation9 + $0x20] sm:$0xff] %v891
    %898 = vst [vmem:[#allocation9 + $0x28] sm:$0xff] %v892
    %v899 = vld [vmem:[#allocation6] sm:$0xff]
    %v900 = vld [vmem:[#allocation6 + $0x8] sm:$0xff]
    %v901 = vld [vmem:[#allocation6 + $0x10] sm:$0xff]
    %v902 = vld [vmem:[#allocation6 + $0x18] sm:$0xff]
    %v903 = vld [vmem:[#allocation6 + $0x20] sm:$0xff]
    %v904 = vld [vmem:[#allocation6 + $0x28] sm:$0xff]
    %v905 = vmul.f32 %v899, %v887
    %v906 = vmul.f32 %v900, %v888
    %v907 = vmul.f32 %v901, %v889
    %v908 = vmul.f32 %v902, %v890
    %v909 = vmul.f32 %v903, %v891
    %v910 = vmul.f32 %v904, %v892
    %v911 = vadd.f32 %v905, %v906
    %v912 = vadd.f32 %v911, %v907
    %v913 = vadd.f32 %v912, %v908
    %v914 = vadd.f32 %v913, %v909
    %v915 = vadd.f32 %v914, %v910
    %916 = vadd.xlane.f32.xlu0 %v915
    %v917 = vpop.xlane.xlu0 %916
    %v918 = vrot.slane %v917, 4
    %v919 = vadd.f32 %v917, %v918
    %v920 = vrot.slane %v919, 2
    %v921 = vadd.f32 %v919, %v920
    %v922 = vrot.slane %v921, 1
    %v923 = vadd.f32 %v921, %v922
    %s924 = vtos %v923
    %v925 = vstv %s924
    %s926 = scalar_lea.vmem [#allocation6], 48
    %v927 = vld [vmem:[%s926] sm:$0xff]
    %v928 = vld [vmem:[%s926 + $0x8] sm:$0xff]
    %v929 = vld [vmem:[%s926 + $0x10] sm:$0xff]
    %v930 = vld [vmem:[%s926 + $0x18] sm:$0xff]
    %v931 = vld [vmem:[%s926 + $0x20] sm:$0xff]
    %v932 = vld [vmem:[%s926 + $0x28] sm:$0xff]
    %v933 = vmul.f32 %v927, %v887
    %v934 = vmul.f32 %v928, %v888
    %v935 = vmul.f32 %v929, %v889
    %v936 = vmul.f32 %v930, %v890
    %v937 = vmul.f32 %v931, %v891
    %v938 = vmul.f32 %v932, %v892
    %v939 = vadd.f32 %v933, %v934
    %v940 = vadd.f32 %v939, %v935
    %v941 = vadd.f32 %v940, %v936
    %v942 = vadd.f32 %v941, %v937
    %v943 = vadd.f32 %v942, %v938
    %944 = vadd.xlane.f32.xlu0 %v943
    %v945 = vpop.xlane.xlu0 %944
    %v946 = vrot.slane %v945, 4
    %v947 = vadd.f32 %v945, %v946
    %v948 = vrot.slane %v947, 2
    %v949 = vadd.f32 %v947, %v948
    %v950 = vrot.slane %v949, 1
    %v951 = vadd.f32 %v949, %v950
    %s952 = vtos %v951
    %v953 = vstv %s952
    %s954 = scalar_lea.vmem [#allocation6], 96
    %v955 = vld [vmem:[%s954] sm:$0xff]
    %v956 = vld [vmem:[%s954 + $0x8] sm:$0xff]
    %v957 = vld [vmem:[%s954 + $0x10] sm:$0xff]
    %v958 = vld [vmem:[%s954 + $0x18] sm:$0xff]
    %v959 = vld [vmem:[%s954 + $0x20] sm:$0xff]
    %v960 = vld [vmem:[%s954 + $0x28] sm:$0xff]
    %v961 = vmul.f32 %v955, %v887
    %v962 = vmul.f32 %v956, %v888
    %v963 = vmul.f32 %v957, %v889
    %v964 = vmul.f32 %v958, %v890
    %v965 = vmul.f32 %v959, %v891
    %v966 = vmul.f32 %v960, %v892
    %v967 = vadd.f32 %v961, %v962
    %v968 = vadd.f32 %v967, %v963
    %v969 = vadd.f32 %v968, %v964
    %v970 = vadd.f32 %v969, %v965
    %v971 = vadd.f32 %v970, %v966
    %972 = vadd.xlane.f32.xlu0 %v971
    %v973 = vpop.xlane.xlu0 %972
    %v974 = vrot.slane %v973, 4
    %v975 = vadd.f32 %v973, %v974
    %v976 = vrot.slane %v975, 2
    %v977 = vadd.f32 %v975, %v976
    %v978 = vrot.slane %v977, 1
    %v979 = vadd.f32 %v977, %v978
    %s980 = vtos %v979
    %v981 = vstv %s980
    %s982 = scalar_lea.vmem [#allocation6], 144
    %v983 = vld [vmem:[%s982] sm:$0xff]
    %v984 = vld [vmem:[%s982 + $0x8] sm:$0xff]
    %v985 = vld [vmem:[%s982 + $0x10] sm:$0xff]
    %v986 = vld [vmem:[%s982 + $0x18] sm:$0xff]
    %v987 = vld [vmem:[%s982 + $0x20] sm:$0xff]
    %v988 = vld [vmem:[%s982 + $0x28] sm:$0xff]
    %v989 = vmul.f32 %v983, %v887
    %v990 = vmul.f32 %v984, %v888
    %v991 = vmul.f32 %v985, %v889
    %v992 = vmul.f32 %v986, %v890
    %v993 = vmul.f32 %v987, %v891
    %v994 = vmul.f32 %v988, %v892
    %v995 = vadd.f32 %v989, %v990
    %v996 = vadd.f32 %v995, %v991
    %v997 = vadd.f32 %v996, %v992
    %v998 = vadd.f32 %v997, %v993
    %v999 = vadd.f32 %v998, %v994
    %1000 = vadd.xlane.f32.xlu0 %v999
    %v1001 = vpop.xlane.xlu0 %1000
    %v1002 = vrot.slane %v1001, 4
    %v1003 = vadd.f32 %v1001, %v1002
    %v1004 = vrot.slane %v1003, 2
    %v1005 = vadd.f32 %v1003, %v1004
    %v1006 = vrot.slane %v1005, 1
    %v1007 = vadd.f32 %v1005, %v1006
    %s1008 = vtos %v1007
    %v1009 = vstv %s1008
    %s1010 = scalar_lea.vmem [#allocation6], 192
    %v1011 = vld [vmem:[%s1010] sm:$0xff]
    %v1012 = vld [vmem:[%s1010 + $0x8] sm:$0xff]
    %v1013 = vld [vmem:[%s1010 + $0x10] sm:$0xff]
    %v1014 = vld [vmem:[%s1010 + $0x18] sm:$0xff]
    %v1015 = vld [vmem:[%s1010 + $0x20] sm:$0xff]
    %v1016 = vld [vmem:[%s1010 + $0x28] sm:$0xff]
    %v1017 = vmul.f32 %v1011, %v887
    %v1018 = vmul.f32 %v1012, %v888
    %v1019 = vmul.f32 %v1013, %v889
    %v1020 = vmul.f32 %v1014, %v890
    %v1021 = vmul.f32 %v1015, %v891
    %v1022 = vmul.f32 %v1016, %v892
    %v1023 = vadd.f32 %v1017, %v1018
    %v1024 = vadd.f32 %v1023, %v1019
    %v1025 = vadd.f32 %v1024, %v1020
    %v1026 = vadd.f32 %v1025, %v1021
    %v1027 = vadd.f32 %v1026, %v1022
    %1028 = vadd.xlane.f32.xlu0 %v1027
    %v1029 = vpop.xlane.xlu0 %1028
    %v1030 = vrot.slane %v1029, 4
    %v1031 = vadd.f32 %v1029, %v1030
    %v1032 = vrot.slane %v1031, 2
    %v1033 = vadd.f32 %v1031, %v1032
    %v1034 = vrot.slane %v1033, 1
    %v1035 = vadd.f32 %v1033, %v1034
    %s1036 = vtos %v1035
    %v1037 = vstv %s1036
    %s1038 = scalar_lea.vmem [#allocation6], 240
    %v1039 = vld [vmem:[%s1038] sm:$0xff]
    %v1040 = vld [vmem:[%s1038 + $0x8] sm:$0xff]
    %v1041 = vld [vmem:[%s1038 + $0x10] sm:$0xff]
    %v1042 = vld [vmem:[%s1038 + $0x18] sm:$0xff]
    %v1043 = vld [vmem:[%s1038 + $0x20] sm:$0xff]
    %v1044 = vld [vmem:[%s1038 + $0x28] sm:$0xff]
    %v1045 = vmul.f32 %v1039, %v887
    %v1046 = vmul.f32 %v1040, %v888
    %v1047 = vmul.f32 %v1041, %v889
    %v1048 = vmul.f32 %v1042, %v890
    %v1049 = vmul.f32 %v1043, %v891
    %v1050 = vmul.f32 %v1044, %v892
    %v1051 = vadd.f32 %v1045, %v1046
    %v1052 = vadd.f32 %v1051, %v1047
    %v1053 = vadd.f32 %v1052, %v1048
    %v1054 = vadd.f32 %v1053, %v1049
    %v1055 = vadd.f32 %v1054, %v1050
    %1056 = vadd.xlane.f32.xlu0 %v1055
    %v1057 = vpop.xlane.xlu0 %1056
    %v1058 = vrot.slane %v1057, 4
    %v1059 = vadd.f32 %v1057, %v1058
    %v1060 = vrot.slane %v1059, 2
    %v1061 = vadd.f32 %v1059, %v1060
    %v1062 = vrot.slane %v1061, 1
    %v1063 = vadd.f32 %v1061, %v1062
    %s1064 = vtos %v1063
    %v1065 = vstv %s1064
    %s1066 = scalar_lea.vmem [#allocation6], 288
    %v1067 = vld [vmem:[%s1066] sm:$0xff]
    %v1068 = vld [vmem:[%s1066 + $0x8] sm:$0xff]
    %v1069 = vld [vmem:[%s1066 + $0x10] sm:$0xff]
    %v1070 = vld [vmem:[%s1066 + $0x18] sm:$0xff]
    %v1071 = vld [vmem:[%s1066 + $0x20] sm:$0xff]
    %v1072 = vld [vmem:[%s1066 + $0x28] sm:$0xff]
    %v1073 = vmul.f32 %v1067, %v887
    %v1074 = vmul.f32 %v1068, %v888
    %v1075 = vmul.f32 %v1069, %v889
    %v1076 = vmul.f32 %v1070, %v890
    %v1077 = vmul.f32 %v1071, %v891
    %v1078 = vmul.f32 %v1072, %v892
    %v1079 = vadd.f32 %v1073, %v1074
    %v1080 = vadd.f32 %v1079, %v1075
    %v1081 = vadd.f32 %v1080, %v1076
    %v1082 = vadd.f32 %v1081, %v1077
    %v1083 = vadd.f32 %v1082, %v1078
    %1084 = vadd.xlane.f32.xlu0 %v1083
    %v1085 = vpop.xlane.xlu0 %1084
    %v1086 = vrot.slane %v1085, 4
    %v1087 = vadd.f32 %v1085, %v1086
    %v1088 = vrot.slane %v1087, 2
    %v1089 = vadd.f32 %v1087, %v1088
    %v1090 = vrot.slane %v1089, 1
    %v1091 = vadd.f32 %v1089, %v1090
    %s1092 = vtos %v1091
    %v1093 = vstv %s1092
    %s1094 = scalar_lea.vmem [#allocation6], 336
    %v1095 = vld [vmem:[%s1094] sm:$0xff]
    %v1096 = vld [vmem:[%s1094 + $0x8] sm:$0xff]
    %v1097 = vld [vmem:[%s1094 + $0x10] sm:$0xff]
    %v1098 = vld [vmem:[%s1094 + $0x18] sm:$0xff]
    %v1099 = vld [vmem:[%s1094 + $0x20] sm:$0xff]
    %v1100 = vld [vmem:[%s1094 + $0x28] sm:$0xff]
    %v1101 = vmul.f32 %v1095, %v887
    %v1102 = vmul.f32 %v1096, %v888
    %v1103 = vmul.f32 %v1097, %v889
    %v1104 = vmul.f32 %v1098, %v890
    %v1105 = vmul.f32 %v1099, %v891
    %v1106 = vmul.f32 %v1100, %v892
    %v1107 = vadd.f32 %v1101, %v1102
    %v1108 = vadd.f32 %v1107, %v1103
    %v1109 = vadd.f32 %v1108, %v1104
    %v1110 = vadd.f32 %v1109, %v1105
    %v1111 = vadd.f32 %v1110, %v1106
    %1112 = vadd.xlane.f32.xlu0 %v1111
    %v1113 = vpop.xlane.xlu0 %1112
    %v1114 = vrot.slane %v1113, 4
    %v1115 = vadd.f32 %v1113, %v1114
    %v1116 = vrot.slane %v1115, 2
    %v1117 = vadd.f32 %v1115, %v1116
    %v1118 = vrot.slane %v1117, 1
    %v1119 = vadd.f32 %v1117, %v1118
    %s1120 = vtos %v1119
    %v1121 = vstv %s1120
    %s1122 = scalar_lea.vmem [#allocation6], 384
    %v1123 = vld [vmem:[%s1122] sm:$0xff]
    %v1124 = vld [vmem:[%s1122 + $0x8] sm:$0xff]
    %v1125 = vld [vmem:[%s1122 + $0x10] sm:$0xff]
    %v1126 = vld [vmem:[%s1122 + $0x18] sm:$0xff]
    %v1127 = vld [vmem:[%s1122 + $0x20] sm:$0xff]
    %v1128 = vld [vmem:[%s1122 + $0x28] sm:$0xff]
    %v1129 = vmul.f32 %v1123, %v887
    %v1130 = vmul.f32 %v1124, %v888
    %v1131 = vmul.f32 %v1125, %v889
    %v1132 = vmul.f32 %v1126, %v890
    %v1133 = vmul.f32 %v1127, %v891
    %v1134 = vmul.f32 %v1128, %v892
    %v1135 = vadd.f32 %v1129, %v1130
    %v1136 = vadd.f32 %v1135, %v1131
    %v1137 = vadd.f32 %v1136, %v1132
    %v1138 = vadd.f32 %v1137, %v1133
    %v1139 = vadd.f32 %v1138, %v1134
    %1140 = vadd.xlane.f32.xlu0 %v1139
    %v1141 = vpop.xlane.xlu0 %1140
    %v1142 = vrot.slane %v1141, 4
    %v1143 = vadd.f32 %v1141, %v1142
    %v1144 = vrot.slane %v1143, 2
    %v1145 = vadd.f32 %v1143, %v1144
    %v1146 = vrot.slane %v1145, 1
    %v1147 = vadd.f32 %v1145, %v1146
    %s1148 = vtos %v1147
    %v1149 = vstv %s1148
    %s1150 = scalar_lea.vmem [#allocation6], 432
    %v1151 = vld [vmem:[%s1150] sm:$0xff]
    %v1152 = vld [vmem:[%s1150 + $0x8] sm:$0xff]
    %v1153 = vld [vmem:[%s1150 + $0x10] sm:$0xff]
    %v1154 = vld [vmem:[%s1150 + $0x18] sm:$0xff]
    %v1155 = vld [vmem:[%s1150 + $0x20] sm:$0xff]
    %v1156 = vld [vmem:[%s1150 + $0x28] sm:$0xff]
    %v1157 = vmul.f32 %v1151, %v887
    %v1158 = vmul.f32 %v1152, %v888
    %v1159 = vmul.f32 %v1153, %v889
    %v1160 = vmul.f32 %v1154, %v890
    %v1161 = vmul.f32 %v1155, %v891
    %v1162 = vmul.f32 %v1156, %v892
    %v1163 = vadd.f32 %v1157, %v1158
    %v1164 = vadd.f32 %v1163, %v1159
    %v1165 = vadd.f32 %v1164, %v1160
    %v1166 = vadd.f32 %v1165, %v1161
    %v1167 = vadd.f32 %v1166, %v1162
    %1168 = vadd.xlane.f32.xlu0 %v1167
    %v1169 = vpop.xlane.xlu0 %1168
    %v1170 = vrot.slane %v1169, 4
    %v1171 = vadd.f32 %v1169, %v1170
    %v1172 = vrot.slane %v1171, 2
    %v1173 = vadd.f32 %v1171, %v1172
    %v1174 = vrot.slane %v1173, 1
    %v1175 = vadd.f32 %v1173, %v1174
    %s1176 = vtos %v1175
    %v1177 = vstv %s1176
    %vm1178 = vcmask 7168
    %v1179 = vsel %vm1178, %v925, %v953
    %vm1180 = vcmask 15360
    %v1181 = vsel %vm1180, %v1179, %v981
    %vm1182 = vcmask 23552
    %v1183 = vsel %vm1182, %v1181, %v1009
    %vm1184 = vcmask 31744
    %v1185 = vsel %vm1184, %v1183, %v1037
    %vm1186 = vcmask 39936
    %v1187 = vsel %vm1186, %v1185, %v1065
    %vm1188 = vcmask 48128
    %v1189 = vsel %vm1188, %v1187, %v1093
    %vm1190 = vcmask 56320
    %v1191 = vsel %vm1190, %v1189, %v1121
    %vm1192 = vcmask 64512
    %v1193 = vsel %vm1192, %v1191, %v1149
    %vm1194 = vcmask 72704
    %v1195 = vsel %vm1194, %v1193, %v1177
    %v1196 = vadd.f32 %v1195, %v71
    %vm1197 = vcmask 73728
    %1198 = vst.msk [vmem:[#allocation11] sm:$0x1] %vm1197, %v1196
    %s1199 = scalar_lea.vmem [#allocation3], 20
    %v1200 = vld [vmem:[%s1199] sm:$0xff]
    %v1201 = vld [vmem:[%s1199 + $0x8] sm:$0xff]
    %v1202 = vld [vmem:[%s1199 + $0x10] sm:$0xf]
    %v1205 = vcombine.high %v1200, %v1200
    %v1206 = vcombine.high %v1201, %v1201
    %v1209 = vcombine.low %v1200, %v1200
    %v1210 = vcombine.low %v1201, %v1201
    %1211 = vrot.lane.b32.xlu0 %v1209, 127
    %v1212 = vpop.permute.xlu0 %1211
    %1213 = vrot.lane.b32.xlu0 %v1200, 127
    %v1214 = vpop.permute.xlu0 %1213
    %1215 = vrot.lane.b32.xlu0 %v1210, 127
    %v1216 = vpop.permute.xlu0 %1215
    %1217 = vrot.lane.b32.xlu0 %v1201, 127
    %v1218 = vpop.permute.xlu0 %1217
    %v1219 = vsel %vm91, %v1212, %v1214
    %v1220 = vsel %vm91, %v1214, %v1216
    %v1221 = vsel %vm91, %v1216, %v1218
    %1226 = vrot.lane.b32.xlu0 %v1200, 126
    %v1227 = vpop.permute.xlu0 %1226
    %1228 = vrot.lane.b32.xlu0 %v1205, 126
    %v1229 = vpop.permute.xlu0 %1228
    %1230 = vrot.lane.b32.xlu0 %v1201, 126
    %v1231 = vpop.permute.xlu0 %1230
    %1232 = vrot.lane.b32.xlu0 %v1206, 126
    %v1233 = vpop.permute.xlu0 %1232
    %v1234 = vsel %vm107, %v1227, %v1229
    %v1235 = vsel %vm107, %v1229, %v1231
    %v1236 = vsel %vm107, %v1231, %v1233
    %1241 = vrot.lane.b32.xlu0 %v1209, 110
    %v1242 = vpop.permute.xlu0 %1241
    %1243 = vrot.lane.b32.xlu0 %v1200, 110
    %v1244 = vpop.permute.xlu0 %1243
    %1245 = vrot.lane.b32.xlu0 %v1210, 110
    %v1246 = vpop.permute.xlu0 %1245
    %1247 = vrot.lane.b32.xlu0 %v1201, 110
    %v1248 = vpop.permute.xlu0 %1247
    %v1249 = vsel %vm123, %v1242, %v1244
    %v1250 = vsel %vm123, %v1244, %v1246
    %v1251 = vsel %vm123, %v1246, %v1248
    %1256 = vrot.lane.b32.xlu0 %v1205, 109
    %v1257 = vpop.permute.xlu0 %1256
    %1258 = vrot.lane.b32.xlu0 %v1201, 109
    %v1259 = vpop.permute.xlu0 %1258
    %1260 = vrot.lane.b32.xlu0 %v1206, 109
    %v1261 = vpop.permute.xlu0 %1260
    %v1262 = vsel %vm137, %v1257, %v1259
    %v1263 = vsel %vm137, %v1259, %v1261
    %v1269 = vcombine.low %v1202, %v1202
    %1270 = vrot.lane.b32.xlu0 %v1200, 108
    %v1271 = vpop.permute.xlu0 %1270
    %1272 = vrot.lane.b32.xlu0 %v1210, 108
    %v1273 = vpop.permute.xlu0 %1272
    %1274 = vrot.lane.b32.xlu0 %v1201, 108
    %v1275 = vpop.permute.xlu0 %1274
    %1276 = vrot.lane.b32.xlu0 %v1269, 108
    %v1277 = vpop.permute.xlu0 %1276
    %v1278 = vsel %vm154, %v1271, %v1273
    %v1279 = vsel %vm154, %v1273, %v1275
    %v1280 = vsel %vm154, %v1275, %v1277
    %1285 = vrot.lane.b32.xlu0 %v1205, 92
    %v1286 = vpop.permute.xlu0 %1285
    %1287 = vrot.lane.b32.xlu0 %v1201, 92
    %v1288 = vpop.permute.xlu0 %1287
    %1289 = vrot.lane.b32.xlu0 %v1206, 92
    %v1290 = vpop.permute.xlu0 %1289
    %1291 = vrot.lane.b32.xlu0 %v1202, 92
    %v1292 = vpop.permute.xlu0 %1291
    %v1293 = vsel %vm170, %v1286, %v1288
    %v1294 = vsel %vm170, %v1288, %v1290
    %v1295 = vsel %vm170, %v1290, %v1292
    %1300 = vrot.lane.b32.xlu0 %v1200, 91
    %v1301 = vpop.permute.xlu0 %1300
    %1302 = vrot.lane.b32.xlu0 %v1210, 91
    %v1303 = vpop.permute.xlu0 %1302
    %1304 = vrot.lane.b32.xlu0 %v1201, 91
    %v1305 = vpop.permute.xlu0 %1304
    %1306 = vrot.lane.b32.xlu0 %v1269, 91
    %v1307 = vpop.permute.xlu0 %1306
    %v1308 = vsel %vm186, %v1301, %v1303
    %v1309 = vsel %vm186, %v1303, %v1305
    %v1310 = vsel %vm186, %v1305, %v1307
    %1315 = vrot.lane.b32.xlu0 %v1205, 90
    %v1316 = vpop.permute.xlu0 %1315
    %1317 = vrot.lane.b32.xlu0 %v1201, 90
    %v1318 = vpop.permute.xlu0 %1317
    %1319 = vrot.lane.b32.xlu0 %v1206, 90
    %v1320 = vpop.permute.xlu0 %1319
    %1321 = vrot.lane.b32.xlu0 %v1202, 90
    %v1322 = vpop.permute.xlu0 %1321
    %v1323 = vsel %vm202, %v1316, %v1318
    %v1324 = vsel %vm202, %v1318, %v1320
    %v1325 = vsel %vm202, %v1320, %v1322
    %v1326 = vsel %vm206, %v1200, %v1219
    %v1327 = vsel %vm206, %v1205, %v1220
    %v1328 = vsel %vm206, %v1201, %v1221
    %v1329 = vsel %vm206, %v1206, %v1218
    %v1330 = vsel %vm206, %v1234, %v1249
    %v1331 = vsel %vm206, %v1235, %v1250
    %v1332 = vsel %vm206, %v1236, %v1251
    %v1333 = vsel %vm206, %v1233, %v1248
    %v1334 = vsel %vm206, %v1257, %v1271
    %v1335 = vsel %vm206, %v1262, %v1278
    %v1336 = vsel %vm206, %v1263, %v1279
    %v1337 = vsel %vm206, %v1261, %v1280
    %v1338 = vsel %vm206, %v1286, %v1301
    %v1339 = vsel %vm206, %v1293, %v1308
    %v1340 = vsel %vm206, %v1294, %v1309
    %v1341 = vsel %vm206, %v1295, %v1310
    %1358 = vrot.lane.b32.xlu0 %v1326, 19
    %v1359 = vpop.permute.xlu0 %1358
    %1360 = vrot.lane.b32.xlu0 %v1327, 19
    %v1361 = vpop.permute.xlu0 %1360
    %1362 = vrot.lane.b32.xlu0 %v1328, 19
    %v1363 = vpop.permute.xlu0 %1362
    %1364 = vrot.lane.b32.xlu0 %v1329, 19
    %v1365 = vpop.permute.xlu0 %1364
    %1366 = vrot.lane.b32.xlu0 %v1330, 19
    %v1367 = vpop.permute.xlu0 %1366
    %1368 = vrot.lane.b32.xlu0 %v1331, 19
    %v1369 = vpop.permute.xlu0 %1368
    %1370 = vrot.lane.b32.xlu0 %v1332, 19
    %v1371 = vpop.permute.xlu0 %1370
    %1372 = vrot.lane.b32.xlu0 %v1333, 19
    %v1373 = vpop.permute.xlu0 %1372
    %1374 = vrot.lane.b32.xlu0 %v1334, 19
    %v1375 = vpop.permute.xlu0 %1374
    %1376 = vrot.lane.b32.xlu0 %v1335, 19
    %v1377 = vpop.permute.xlu0 %1376
    %1378 = vrot.lane.b32.xlu0 %v1336, 19
    %v1379 = vpop.permute.xlu0 %1378
    %1380 = vrot.lane.b32.xlu0 %v1337, 19
    %v1381 = vpop.permute.xlu0 %1380
    %1382 = vrot.lane.b32.xlu0 %v1338, 19
    %v1383 = vpop.permute.xlu0 %1382
    %1384 = vrot.lane.b32.xlu0 %v1339, 19
    %v1385 = vpop.permute.xlu0 %1384
    %1386 = vrot.lane.b32.xlu0 %v1340, 19
    %v1387 = vpop.permute.xlu0 %1386
    %1388 = vrot.lane.b32.xlu0 %v1341, 19
    %v1389 = vpop.permute.xlu0 %1388
    %1390 = vrot.lane.b32.xlu0 %v1316, 19
    %v1391 = vpop.permute.xlu0 %1390
    %1392 = vrot.lane.b32.xlu0 %v1323, 19
    %v1393 = vpop.permute.xlu0 %1392
    %1394 = vrot.lane.b32.xlu0 %v1324, 19
    %v1395 = vpop.permute.xlu0 %1394
    %1396 = vrot.lane.b32.xlu0 %v1325, 19
    %v1397 = vpop.permute.xlu0 %1396
    %v1398 = vsel %vm284, %v1359, %v1361
    %v1399 = vsel %vm284, %v1361, %v1363
    %v1400 = vsel %vm284, %v1363, %v1365
    %v1401 = vsel %vm284, %v1367, %v1369
    %v1402 = vsel %vm284, %v1369, %v1371
    %v1403 = vsel %vm284, %v1371, %v1373
    %v1404 = vsel %vm284, %v1375, %v1377
    %v1405 = vsel %vm284, %v1377, %v1379
    %v1406 = vsel %vm284, %v1379, %v1381
    %v1407 = vsel %vm284, %v1383, %v1385
    %v1408 = vsel %vm284, %v1385, %v1387
    %v1409 = vsel %vm284, %v1387, %v1389
    %v1410 = vsel %vm284, %v1391, %v1393
    %v1411 = vsel %vm284, %v1393, %v1395
    %v1412 = vsel %vm284, %v1395, %v1397
    %v1425 = vsel %vm206, %v1410, 0
    %v1427 = vsel %vm206, %v1411, 0
    %v1429 = vsel %vm206, %v1412, 0
    %1431 = vmatprep.subr.mxu0 %v1399
    %1432 = vmatpush1.msra.mxu0 %v1398
    %1433 = vmatprep.subr.mxu0 %v1402
    %1434 = vmatpush1.msra.mxu0 %v1401
    %1435 = vmatprep.subr.mxu0 %v1405
    %1436 = vmatpush1.msra.mxu0 %v1404
    %1437 = vmatprep.subr.mxu0 %v1408
    %1438 = vmatpush1.msra.mxu0 %v1407
    %1439 = vmatprep.subr.mxu0 %v1427
    %1440 = vmatpush1.msra.mxu0 %v1425
    %1441 = vmatprep.subr.mxu0 0.0
    %1442 = vmatpush1.msra.mxu0 0.0
    %1443 = vmatprep.subr.mxu0 0.0
    %1444 = vmatpush1.msra.mxu0 0.0
    %1445 = vmatprep.subr.mxu0 0.0
    %1446 = vmatpush1.msra.mxu0 0.0
    %1447 = vmatprep.subr.mxu0 0.0
    %1448 = vmatpush1.msra.mxu0 0.0
    %1449 = vmatprep.subr.mxu0 0.0
    %1450 = vmatpush1.msra.mxu0 0.0
    %1451 = vmatprep.subr.mxu0 0.0
    %1452 = vmatpush1.msra.mxu0 0.0
    %1453 = vmatprep.subr.mxu0 0.0
    %1454 = vmatpush1.msra.mxu0 0.0
    %1455 = vmatprep.subr.mxu0 0.0
    %1456 = vmatpush1.msra.mxu0 0.0
    %1457 = vmatprep.subr.mxu0 0.0
    %1458 = vmatpush1.msra.mxu0 0.0
    %1459 = vmatprep.subr.mxu0 0.0
    %1460 = vmatpush1.msra.mxu0 0.0
    %1461 = vmatprep.subr.mxu0 0.0
    %1462 = vmatpush1.msra.mxu0 0.0
    %1463 = vmatprep.subr.mxu0 0.0
    %1464 = vmatpush1.msra.mxu0 0.0
    %1465 = vmatprep.subr.mxu0 0.0
    %1466 = vmatpush1.msra.mxu0 0.0
    %1467 = vmatprep.subr.mxu0 0.0
    %1468 = vmatpush1.msra.mxu0 0.0
    %1469 = vmatprep.subr.mxu0 0.0
    %1470 = vmatpush1.msra.mxu0 0.0
    %1471 = vmatprep.subr.mxu0 0.0
    %1472 = vmatpush1.msra.mxu0 0.0
    %1473 = vmatprep.subr.mxu0 0.0
    %1474 = vmatpush1.msra.mxu0 0.0
    %1475 = vmatprep.subr.mxu0 0.0
    %1476 = vmatpush1.msra.mxu0 0.0
    %1477 = vmatprep.subr.mxu0 0.0
    %1478 = vmatpush1.msra.mxu0 0.0
    %1479 = vmatprep.subr.mxu0 0.0
    %1480 = vmatpush1.msra.mxu0 0.0
    %1481 = vmatprep.subr.mxu0 0.0
    %1482 = vmatpush1.msra.mxu0 0.0
    %1483 = vmatprep.subr.mxu0 0.0
    %1484 = vmatpush1.msra.mxu0 0.0
    %1485 = vmatprep.subr.mxu0 0.0
    %1486 = vmatpush1.msra.mxu0 0.0
    %1487 = vmatprep.subr.mxu0 0.0
    %1488 = vmatpush1.msra.mxu0 0.0
    %1489 = vmatprep.subr.mxu0 0.0
    %1490 = vmatpush1.msra.mxu0 0.0
    %1491 = vmatprep.subr.mxu0 0.0
    %1492 = vmatpush1.msra.mxu0 0.0
    %1493 = vmatprep.subr.mxu0 0.0
    %1494 = vmatpush1.msra.mxu0 0.0
    %1495 = vmatprep.mubr.f32.mxu0 0.0
    %1496 = vmatmul.mubr.f32.gmra.mrb[0].mxu0 %v314
    %v1497 = vpop.f32.mrb[0].mxu0
    %v1498 = vadd.f32 %v226, %v1497
    %v1499 = vpop.f32.mrb[0].mxu0
    %v1500 = vadd.f32 %v226, %v1499
    %1501 = vdwg.mxu0
    %1502 = vmatprep.subr.mxu0 0.0
    %1503 = vmatpush1.msra.mxu0 %v1400
    %1504 = vmatprep.subr.mxu0 0.0
    %1505 = vmatpush1.msra.mxu0 %v1403
    %1506 = vmatprep.subr.mxu0 0.0
    %1507 = vmatpush1.msra.mxu0 %v1406
    %1508 = vmatprep.subr.mxu0 0.0
    %1509 = vmatpush1.msra.mxu0 %v1409
    %1510 = vmatprep.subr.mxu0 0.0
    %1511 = vmatpush1.msra.mxu0 %v1429
    %1512 = vmatprep.subr.mxu0 0.0
    %1513 = vmatpush1.msra.mxu0 0.0
    %1514 = vmatprep.subr.mxu0 0.0
    %1515 = vmatpush1.msra.mxu0 0.0
    %1516 = vmatprep.subr.mxu0 0.0
    %1517 = vmatpush1.msra.mxu0 0.0
    %1518 = vmatprep.subr.mxu0 0.0
    %1519 = vmatpush1.msra.mxu0 0.0
    %1520 = vmatprep.subr.mxu0 0.0
    %1521 = vmatpush1.msra.mxu0 0.0
    %1522 = vmatprep.subr.mxu0 0.0
    %1523 = vmatpush1.msra.mxu0 0.0
    %1524 = vmatprep.subr.mxu0 0.0
    %1525 = vmatpush1.msra.mxu0 0.0
    %1526 = vmatprep.subr.mxu0 0.0
    %1527 = vmatpush1.msra.mxu0 0.0
    %1528 = vmatprep.subr.mxu0 0.0
    %1529 = vmatpush1.msra.mxu0 0.0
    %1530 = vmatprep.subr.mxu0 0.0
    %1531 = vmatpush1.msra.mxu0 0.0
    %1532 = vmatprep.subr.mxu0 0.0
    %1533 = vmatpush1.msra.mxu0 0.0
    %1534 = vmatprep.subr.mxu0 0.0
    %1535 = vmatpush1.msra.mxu0 0.0
    %1536 = vmatprep.subr.mxu0 0.0
    %1537 = vmatpush1.msra.mxu0 0.0
    %1538 = vmatprep.subr.mxu0 0.0
    %1539 = vmatpush1.msra.mxu0 0.0
    %1540 = vmatprep.subr.mxu0 0.0
    %1541 = vmatpush1.msra.mxu0 0.0
    %1542 = vmatprep.subr.mxu0 0.0
    %1543 = vmatpush1.msra.mxu0 0.0
    %1544 = vmatprep.subr.mxu0 0.0
    %1545 = vmatpush1.msra.mxu0 0.0
    %1546 = vmatprep.subr.mxu0 0.0
    %1547 = vmatpush1.msra.mxu0 0.0
    %1548 = vmatprep.subr.mxu0 0.0
    %1549 = vmatpush1.msra.mxu0 0.0
    %1550 = vmatprep.subr.mxu0 0.0
    %1551 = vmatpush1.msra.mxu0 0.0
    %1552 = vmatprep.subr.mxu0 0.0
    %1553 = vmatpush1.msra.mxu0 0.0
    %1554 = vmatprep.subr.mxu0 0.0
    %1555 = vmatpush1.msra.mxu0 0.0
    %1556 = vmatprep.subr.mxu0 0.0
    %1557 = vmatpush1.msra.mxu0 0.0
    %1558 = vmatprep.subr.mxu0 0.0
    %1559 = vmatpush1.msra.mxu0 0.0
    %1560 = vmatprep.subr.mxu0 0.0
    %1561 = vmatpush1.msra.mxu0 0.0
    %1562 = vmatprep.subr.mxu0 0.0
    %1563 = vmatpush1.msra.mxu0 0.0
    %1564 = vmatprep.subr.mxu0 0.0
    %1565 = vmatpush1.msra.mxu0 0.0
    %1566 = vmatprep.mubr.f32.mxu0 0.0
    %1567 = vmatmul.mubr.f32.gmra.mrb[0].mxu0 %v314
    %v1568 = vpop.f32.mrb[0].mxu0
    %v1569 = vadd.f32 %v226, %v1568
    %v1570 = vpop.f32.mrb[0].mxu0
    %1571 = vdwg.mxu0
    %v1572 = vmax.f32 %v1498, 0.0
    %v1573 = vmax.f32 %v1500, 0.0
    %v1574 = vmax.f32 %v1569, 0.0
    %v1575 = vmul.f32 %v1572, %v470
    %v1576 = vmul.f32 %v1573, %v474
    %v1577 = vmul.f32 %v1574, %v478
    %s1578 = scalar_lea.vmem [#allocation8], 24
    %1579 = vst [vmem:[%s1578] sm:$0xff] %v1575
    %1580 = vst [vmem:[%s1578 + $0x8] sm:$0xff] %v1576
    %1581 = vst [vmem:[%s1578 + $0x10] sm:$0xff] %v1577
    %1582 = vst [vmem:[#allocation2 + $0x8] sm:$0xff] %v1575
    %1583 = vst [vmem:[#allocation2 + $0x10] sm:$0xff] %v1576
    %1584 = vst [vmem:[#allocation2 + $0x18] sm:$0xff] %v1577
    %v1585 = vld [vmem:[#allocation2] sm:$0xff]
    %v1586 = vld [vmem:[#allocation2 + $0x8] sm:$0xff]
    %v1587 = vld [vmem:[#allocation2 + $0x10] sm:$0xff]
    %v1588 = vld [vmem:[#allocation2 + $0x18] sm:$0xff]
    %v1589 = vld [vmem:[#allocation2 + $0x8] sm:$0xff]
    %v1590 = vld [vmem:[#allocation2 + $0x10] sm:$0xff]
    %v1591 = vld [vmem:[#allocation2 + $0x18] sm:$0xff]
    %v1592 = vld [vmem:[#allocation2 + $0x20] sm:$0xff]
    %1597 = vrot.lane.b32.xlu0 %v1585, 127
    %v1598 = vpop.permute.xlu0 %1597
    %1599 = vrot.lane.b32.xlu0 %v1586, 127
    %v1600 = vpop.permute.xlu0 %1599
    %1601 = vrot.lane.b32.xlu0 %v1587, 127
    %v1602 = vpop.permute.xlu0 %1601
    %1603 = vrot.lane.b32.xlu0 %v1588, 127
    %v1604 = vpop.permute.xlu0 %1603
    %v1605 = vsel %vm91, %v1598, %v1600
    %v1606 = vsel %vm91, %v1600, %v1602
    %v1607 = vsel %vm91, %v1602, %v1604
    %1608 = vrot.lane.b32.xlu0 %v1585, 126
    %v1609 = vpop.permute.xlu0 %1608
    %1610 = vrot.lane.b32.xlu0 %v1586, 126
    %v1611 = vpop.permute.xlu0 %1610
    %1612 = vrot.lane.b32.xlu0 %v1587, 126
    %v1613 = vpop.permute.xlu0 %1612
    %1614 = vrot.lane.b32.xlu0 %v1588, 126
    %v1615 = vpop.permute.xlu0 %1614
    %v1616 = vsel %vm107, %v1609, %v1611
    %v1617 = vsel %vm107, %v1611, %v1613
    %v1618 = vsel %vm107, %v1613, %v1615
    %1619 = vrot.lane.b32.xlu0 %v1585, 110
    %v1620 = vpop.permute.xlu0 %1619
    %1621 = vrot.lane.b32.xlu0 %v1586, 110
    %v1622 = vpop.permute.xlu0 %1621
    %1623 = vrot.lane.b32.xlu0 %v1587, 110
    %v1624 = vpop.permute.xlu0 %1623
    %1625 = vrot.lane.b32.xlu0 %v1588, 110
    %v1626 = vpop.permute.xlu0 %1625
    %v1627 = vsel %vm123, %v1620, %v1622
    %v1628 = vsel %vm123, %v1622, %v1624
    %v1629 = vsel %vm123, %v1624, %v1626
    %1630 = vrot.lane.b32.xlu0 %v1586, 109
    %v1631 = vpop.permute.xlu0 %1630
    %1632 = vrot.lane.b32.xlu0 %v1587, 109
    %v1633 = vpop.permute.xlu0 %1632
    %1634 = vrot.lane.b32.xlu0 %v1588, 109
    %v1635 = vpop.permute.xlu0 %1634
    %v1636 = vsel %vm137, %v1631, %v1633
    %v1637 = vsel %vm137, %v1633, %v1635
    %1642 = vrot.lane.b32.xlu0 %v1589, 108
    %v1643 = vpop.permute.xlu0 %1642
    %1644 = vrot.lane.b32.xlu0 %v1590, 108
    %v1645 = vpop.permute.xlu0 %1644
    %1646 = vrot.lane.b32.xlu0 %v1591, 108
    %v1647 = vpop.permute.xlu0 %1646
    %1648 = vrot.lane.b32.xlu0 %v1592, 108
    %v1649 = vpop.permute.xlu0 %1648
    %v1650 = vsel %vm154, %v1643, %v1645
    %v1651 = vsel %vm154, %v1645, %v1647
    %v1652 = vsel %vm154, %v1647, %v1649
    %1653 = vrot.lane.b32.xlu0 %v1589, 92
    %v1654 = vpop.permute.xlu0 %1653
    %1655 = vrot.lane.b32.xlu0 %v1590, 92
    %v1656 = vpop.permute.xlu0 %1655
    %1657 = vrot.lane.b32.xlu0 %v1591, 92
    %v1658 = vpop.permute.xlu0 %1657
    %1659 = vrot.lane.b32.xlu0 %v1592, 92
    %v1660 = vpop.permute.xlu0 %1659
    %v1661 = vsel %vm170, %v1654, %v1656
    %v1662 = vsel %vm170, %v1656, %v1658
    %v1663 = vsel %vm170, %v1658, %v1660
    %1664 = vrot.lane.b32.xlu0 %v1589, 91
    %v1665 = vpop.permute.xlu0 %1664
    %1666 = vrot.lane.b32.xlu0 %v1590, 91
    %v1667 = vpop.permute.xlu0 %1666
    %1668 = vrot.lane.b32.xlu0 %v1591, 91
    %v1669 = vpop.permute.xlu0 %1668
    %1670 = vrot.lane.b32.xlu0 %v1592, 91
    %v1671 = vpop.permute.xlu0 %1670
    %v1672 = vsel %vm186, %v1665, %v1667
    %v1673 = vsel %vm186, %v1667, %v1669
    %v1674 = vsel %vm186, %v1669, %v1671
    %1675 = vrot.lane.b32.xlu0 %v1589, 90
    %v1676 = vpop.permute.xlu0 %1675
    %1677 = vrot.lane.b32.xlu0 %v1590, 90
    %v1678 = vpop.permute.xlu0 %1677
    %1679 = vrot.lane.b32.xlu0 %v1591, 90
    %v1680 = vpop.permute.xlu0 %1679
    %1681 = vrot.lane.b32.xlu0 %v1592, 90
    %v1682 = vpop.permute.xlu0 %1681
    %v1683 = vsel %vm202, %v1676, %v1678
    %v1684 = vsel %vm202, %v1678, %v1680
    %v1685 = vsel %vm202, %v1680, %v1682
    %1686 = vrot.lane.b32.xlu0 %v1585, 19
    %v1687 = vpop.permute.xlu0 %1686
    %1688 = vrot.lane.b32.xlu0 %v1586, 19
    %v1689 = vpop.permute.xlu0 %1688
    %1690 = vrot.lane.b32.xlu0 %v1587, 19
    %v1691 = vpop.permute.xlu0 %1690
    %1692 = vrot.lane.b32.xlu0 %v1588, 19
    %v1693 = vpop.permute.xlu0 %1692
    %1694 = vrot.lane.b32.xlu0 %v1605, 19
    %v1695 = vpop.permute.xlu0 %1694
    %1696 = vrot.lane.b32.xlu0 %v1606, 19
    %v1697 = vpop.permute.xlu0 %1696
    %1698 = vrot.lane.b32.xlu0 %v1607, 19
    %v1699 = vpop.permute.xlu0 %1698
    %1700 = vrot.lane.b32.xlu0 %v1604, 19
    %v1701 = vpop.permute.xlu0 %1700
    %1702 = vrot.lane.b32.xlu0 %v1616, 19
    %v1703 = vpop.permute.xlu0 %1702
    %1704 = vrot.lane.b32.xlu0 %v1617, 19
    %v1705 = vpop.permute.xlu0 %1704
    %1706 = vrot.lane.b32.xlu0 %v1618, 19
    %v1707 = vpop.permute.xlu0 %1706
    %1708 = vrot.lane.b32.xlu0 %v1615, 19
    %v1709 = vpop.permute.xlu0 %1708
    %1710 = vrot.lane.b32.xlu0 %v1627, 19
    %v1711 = vpop.permute.xlu0 %1710
    %1712 = vrot.lane.b32.xlu0 %v1628, 19
    %v1713 = vpop.permute.xlu0 %1712
    %1714 = vrot.lane.b32.xlu0 %v1629, 19
    %v1715 = vpop.permute.xlu0 %1714
    %1716 = vrot.lane.b32.xlu0 %v1626, 19
    %v1717 = vpop.permute.xlu0 %1716
    %1718 = vrot.lane.b32.xlu0 %v1631, 19
    %v1719 = vpop.permute.xlu0 %1718
    %1720 = vrot.lane.b32.xlu0 %v1636, 19
    %v1721 = vpop.permute.xlu0 %1720
    %1722 = vrot.lane.b32.xlu0 %v1637, 19
    %v1723 = vpop.permute.xlu0 %1722
    %1724 = vrot.lane.b32.xlu0 %v1635, 19
    %v1725 = vpop.permute.xlu0 %1724
    %1726 = vrot.lane.b32.xlu0 %v1643, 19
    %v1727 = vpop.permute.xlu0 %1726
    %1728 = vrot.lane.b32.xlu0 %v1650, 19
    %v1729 = vpop.permute.xlu0 %1728
    %1730 = vrot.lane.b32.xlu0 %v1651, 19
    %v1731 = vpop.permute.xlu0 %1730
    %1732 = vrot.lane.b32.xlu0 %v1652, 19
    %v1733 = vpop.permute.xlu0 %1732
    %1734 = vrot.lane.b32.xlu0 %v1654, 19
    %v1735 = vpop.permute.xlu0 %1734
    %1736 = vrot.lane.b32.xlu0 %v1661, 19
    %v1737 = vpop.permute.xlu0 %1736
    %1738 = vrot.lane.b32.xlu0 %v1662, 19
    %v1739 = vpop.permute.xlu0 %1738
    %1740 = vrot.lane.b32.xlu0 %v1663, 19
    %v1741 = vpop.permute.xlu0 %1740
    %1742 = vrot.lane.b32.xlu0 %v1665, 19
    %v1743 = vpop.permute.xlu0 %1742
    %1744 = vrot.lane.b32.xlu0 %v1672, 19
    %v1745 = vpop.permute.xlu0 %1744
    %1746 = vrot.lane.b32.xlu0 %v1673, 19
    %v1747 = vpop.permute.xlu0 %1746
    %1748 = vrot.lane.b32.xlu0 %v1674, 19
    %v1749 = vpop.permute.xlu0 %1748
    %1750 = vrot.lane.b32.xlu0 %v1676, 19
    %v1751 = vpop.permute.xlu0 %1750
    %1752 = vrot.lane.b32.xlu0 %v1683, 19
    %v1753 = vpop.permute.xlu0 %1752
    %1754 = vrot.lane.b32.xlu0 %v1684, 19
    %v1755 = vpop.permute.xlu0 %1754
    %1756 = vrot.lane.b32.xlu0 %v1685, 19
    %v1757 = vpop.permute.xlu0 %1756
    %v1758 = vsel %vm284, %v1687, %v1689
    %v1759 = vsel %vm284, %v1689, %v1691
    %v1760 = vsel %vm284, %v1691, %v1693
    %v1761 = vsel %vm284, %v1695, %v1697
    %v1762 = vsel %vm284, %v1697, %v1699
    %v1763 = vsel %vm284, %v1699, %v1701
    %v1764 = vsel %vm284, %v1703, %v1705
    %v1765 = vsel %vm284, %v1705, %v1707
    %v1766 = vsel %vm284, %v1707, %v1709
    %v1767 = vsel %vm284, %v1711, %v1713
    %v1768 = vsel %vm284, %v1713, %v1715
    %v1769 = vsel %vm284, %v1715, %v1717
    %v1770 = vsel %vm284, %v1719, %v1721
    %v1771 = vsel %vm284, %v1721, %v1723
    %v1772 = vsel %vm284, %v1723, %v1725
    %v1773 = vsel %vm284, %v1727, %v1729
    %v1774 = vsel %vm284, %v1729, %v1731
    %v1775 = vsel %vm284, %v1731, %v1733
    %v1776 = vsel %vm284, %v1735, %v1737
    %v1777 = vsel %vm284, %v1737, %v1739
    %v1778 = vsel %vm284, %v1739, %v1741
    %v1779 = vsel %vm284, %v1743, %v1745
    %v1780 = vsel %vm284, %v1745, %v1747
    %v1781 = vsel %vm284, %v1747, %v1749
    %v1782 = vsel %vm284, %v1751, %v1753
    %v1783 = vsel %vm284, %v1753, %v1755
    %v1784 = vsel %vm284, %v1755, %v1757
    %1812 = vmatprep.subr.mxu0 %v1759
    %1813 = vmatpush1.msra.mxu0 %v1758
    %1814 = vmatprep.subr.mxu0 %v1762
    %1815 = vmatpush1.msra.mxu0 %v1761
    %1816 = vmatprep.subr.mxu0 %v1765
    %1817 = vmatpush1.msra.mxu0 %v1764
    %1818 = vmatprep.subr.mxu0 %v1768
    %1819 = vmatpush1.msra.mxu0 %v1767
    %1820 = vmatprep.subr.mxu0 %v1771
    %1821 = vmatpush1.msra.mxu0 %v1770
    %1822 = vmatprep.subr.mxu0 %v1774
    %1823 = vmatpush1.msra.mxu0 %v1773
    %1824 = vmatprep.subr.mxu0 %v1777
    %1825 = vmatpush1.msra.mxu0 %v1776
    %1826 = vmatprep.subr.mxu0 %v1780
    %1827 = vmatpush1.msra.mxu0 %v1779
    %1828 = vmatprep.subr.mxu0 %v1783
    %1829 = vmatpush1.msra.mxu0 %v1782
    %1830 = vmatprep.subr.mxu0 0.0
    %1831 = vmatpush1.msra.mxu0 0.0
    %1832 = vmatprep.subr.mxu0 0.0
    %1833 = vmatpush1.msra.mxu0 0.0
    %1834 = vmatprep.subr.mxu0 0.0
    %1835 = vmatpush1.msra.mxu0 0.0
    %1836 = vmatprep.subr.mxu0 0.0
    %1837 = vmatpush1.msra.mxu0 0.0
    %1838 = vmatprep.subr.mxu0 0.0
    %1839 = vmatpush1.msra.mxu0 0.0
    %1840 = vmatprep.subr.mxu0 0.0
    %1841 = vmatpush1.msra.mxu0 0.0
    %1842 = vmatprep.subr.mxu0 0.0
    %1843 = vmatpush1.msra.mxu0 0.0
    %1844 = vmatprep.subr.mxu0 0.0
    %1845 = vmatpush1.msra.mxu0 0.0
    %1846 = vmatprep.subr.mxu0 0.0
    %1847 = vmatpush1.msra.mxu0 0.0
    %1848 = vmatprep.subr.mxu0 0.0
    %1849 = vmatpush1.msra.mxu0 0.0
    %1850 = vmatprep.subr.mxu0 0.0
    %1851 = vmatpush1.msra.mxu0 0.0
    %1852 = vmatprep.subr.mxu0 0.0
    %1853 = vmatpush1.msra.mxu0 0.0
    %1854 = vmatprep.subr.mxu0 0.0
    %1855 = vmatpush1.msra.mxu0 0.0
    %1856 = vmatprep.subr.mxu0 0.0
    %1857 = vmatpush1.msra.mxu0 0.0
    %1858 = vmatprep.subr.mxu0 0.0
    %1859 = vmatpush1.msra.mxu0 0.0
    %1860 = vmatprep.subr.mxu0 0.0
    %1861 = vmatpush1.msra.mxu0 0.0
    %1862 = vmatprep.subr.mxu0 0.0
    %1863 = vmatpush1.msra.mxu0 0.0
    %1864 = vmatprep.subr.mxu0 0.0
    %1865 = vmatpush1.msra.mxu0 0.0
    %1866 = vmatprep.subr.mxu0 0.0
    %1867 = vmatpush1.msra.mxu0 0.0
    %1868 = vmatprep.subr.mxu0 0.0
    %1869 = vmatpush1.msra.mxu0 0.0
    %1870 = vmatprep.subr.mxu0 0.0
    %1871 = vmatpush1.msra.mxu0 0.0
    %1872 = vmatprep.subr.mxu0 0.0
    %1873 = vmatpush1.msra.mxu0 0.0
    %1874 = vmatprep.subr.mxu0 0.0
    %1875 = vmatpush1.msra.mxu0 0.0
    %1876 = vmatprep.mubr.f32.mxu0 0.0
    %1877 = vmatmul.mubr.f32.gmra.mrb[0].mxu0 %v730
    %v1878 = vpop.f32.mrb[0].mxu0
    %v1879 = vadd.f32 %v595, %v1878
    %v1880 = vpop.f32.mrb[0].mxu0
    %v1881 = vadd.f32 %v595, %v1880
    %1882 = vmatprep.mubr.f32.mxu0 0.0
    %1883 = vmatmul.mubr.f32.gmra.mrb[0].mxu0 %v733
    %v1884 = vpop.f32.mrb[0].mxu0
    %v1885 = vadd.f32 %v600, %v1884
    %v1886 = vpop.f32.mrb[0].mxu0
    %v1887 = vadd.f32 %v600, %v1886
    %1888 = vdwg.mxu0
    %1889 = vmatprep.subr.mxu0 0.0
    %1890 = vmatpush1.msra.mxu0 %v1760
    %1891 = vmatprep.subr.mxu0 0.0
    %1892 = vmatpush1.msra.mxu0 %v1763
    %1893 = vmatprep.subr.mxu0 0.0
    %1894 = vmatpush1.msra.mxu0 %v1766
    %1895 = vmatprep.subr.mxu0 0.0
    %1896 = vmatpush1.msra.mxu0 %v1769
    %1897 = vmatprep.subr.mxu0 0.0
    %1898 = vmatpush1.msra.mxu0 %v1772
    %1899 = vmatprep.subr.mxu0 0.0
    %1900 = vmatpush1.msra.mxu0 %v1775
    %1901 = vmatprep.subr.mxu0 0.0
    %1902 = vmatpush1.msra.mxu0 %v1778
    %1903 = vmatprep.subr.mxu0 0.0
    %1904 = vmatpush1.msra.mxu0 %v1781
    %1905 = vmatprep.subr.mxu0 0.0
    %1906 = vmatpush1.msra.mxu0 %v1784
    %1907 = vmatprep.subr.mxu0 0.0
    %1908 = vmatpush1.msra.mxu0 0.0
    %1909 = vmatprep.subr.mxu0 0.0
    %1910 = vmatpush1.msra.mxu0 0.0
    %1911 = vmatprep.subr.mxu0 0.0
    %1912 = vmatpush1.msra.mxu0 0.0
    %1913 = vmatprep.subr.mxu0 0.0
    %1914 = vmatpush1.msra.mxu0 0.0
    %1915 = vmatprep.subr.mxu0 0.0
    %1916 = vmatpush1.msra.mxu0 0.0
    %1917 = vmatprep.subr.mxu0 0.0
    %1918 = vmatpush1.msra.mxu0 0.0
    %1919 = vmatprep.subr.mxu0 0.0
    %1920 = vmatpush1.msra.mxu0 0.0
    %1921 = vmatprep.subr.mxu0 0.0
    %1922 = vmatpush1.msra.mxu0 0.0
    %1923 = vmatprep.subr.mxu0 0.0
    %1924 = vmatpush1.msra.mxu0 0.0
    %1925 = vmatprep.subr.mxu0 0.0
    %1926 = vmatpush1.msra.mxu0 0.0
    %1927 = vmatprep.subr.mxu0 0.0
    %1928 = vmatpush1.msra.mxu0 0.0
    %1929 = vmatprep.subr.mxu0 0.0
    %1930 = vmatpush1.msra.mxu0 0.0
    %1931 = vmatprep.subr.mxu0 0.0
    %1932 = vmatpush1.msra.mxu0 0.0
    %1933 = vmatprep.subr.mxu0 0.0
    %1934 = vmatpush1.msra.mxu0 0.0
    %1935 = vmatprep.subr.mxu0 0.0
    %1936 = vmatpush1.msra.mxu0 0.0
    %1937 = vmatprep.subr.mxu0 0.0
    %1938 = vmatpush1.msra.mxu0 0.0
    %1939 = vmatprep.subr.mxu0 0.0
    %1940 = vmatpush1.msra.mxu0 0.0
    %1941 = vmatprep.subr.mxu0 0.0
    %1942 = vmatpush1.msra.mxu0 0.0
    %1943 = vmatprep.subr.mxu0 0.0
    %1944 = vmatpush1.msra.mxu0 0.0
    %1945 = vmatprep.subr.mxu0 0.0
    %1946 = vmatpush1.msra.mxu0 0.0
    %1947 = vmatprep.subr.mxu0 0.0
    %1948 = vmatpush1.msra.mxu0 0.0
    %1949 = vmatprep.subr.mxu0 0.0
    %1950 = vmatpush1.msra.mxu0 0.0
    %1951 = vmatprep.subr.mxu0 0.0
    %1952 = vmatpush1.msra.mxu0 0.0
    %1953 = vmatprep.mubr.f32.mxu0 0.0
    %1954 = vmatmul.mubr.f32.gmra.mrb[0].mxu0 %v730
    %v1955 = vpop.f32.mrb[0].mxu0
    %v1956 = vadd.f32 %v595, %v1955
    %v1957 = vpop.f32.mrb[0].mxu0
    %1958 = vmatprep.mubr.f32.mxu0 0.0
    %1959 = vmatmul.mubr.f32.gmra.mrb[0].mxu0 %v733
    %v1960 = vpop.f32.mrb[0].mxu0
    %v1961 = vadd.f32 %v600, %v1960
    %v1962 = vpop.f32.mrb[0].mxu0
    %1963 = vdwg.mxu0
    %v1964 = vmax.f32 %v1879, 0.0
    %v1965 = vmax.f32 %v1881, 0.0
    %v1966 = vmax.f32 %v1956, 0.0
    %v1967 = vmax.f32 %v1885, 0.0
    %v1968 = vmax.f32 %v1887, 0.0
    %v1969 = vmax.f32 %v1961, 0.0
    %s1970 = scalar_lea.vmem [#allocation9], 48
    %1971 = vst [vmem:[%s1970] sm:$0xff] %v1964
    %1972 = vst [vmem:[%s1970 + $0x8] sm:$0xff] %v1965
    %1973 = vst [vmem:[%s1970 + $0x10] sm:$0xff] %v1966
    %1974 = vst [vmem:[%s1970 + $0x18] sm:$0xff] %v1967
    %1975 = vst [vmem:[%s1970 + $0x20] sm:$0xff] %v1968
    %1976 = vst [vmem:[%s1970 + $0x28] sm:$0xff] %v1969
    %v1977 = vld [vmem:[#allocation6] sm:$0xff]
    %v1978 = vld [vmem:[#allocation6 + $0x8] sm:$0xff]
    %v1979 = vld [vmem:[#allocation6 + $0x10] sm:$0xff]
    %v1980 = vld [vmem:[#allocation6 + $0x18] sm:$0xff]
    %v1981 = vld [vmem:[#allocation6 + $0x20] sm:$0xff]
    %v1982 = vld [vmem:[#allocation6 + $0x28] sm:$0xff]
    %v1983 = vmul.f32 %v1977, %v1964
    %v1984 = vmul.f32 %v1978, %v1965
    %v1985 = vmul.f32 %v1979, %v1966
    %v1986 = vmul.f32 %v1980, %v1967
    %v1987 = vmul.f32 %v1981, %v1968
    %v1988 = vmul.f32 %v1982, %v1969
    %v1989 = vadd.f32 %v1983, %v1984
    %v1990 = vadd.f32 %v1989, %v1985
    %v1991 = vadd.f32 %v1990, %v1986
    %v1992 = vadd.f32 %v1991, %v1987
    %v1993 = vadd.f32 %v1992, %v1988
    %1994 = vadd.xlane.f32.xlu0 %v1993
    %v1995 = vpop.xlane.xlu0 %1994
    %v1996 = vrot.slane %v1995, 4
    %v1997 = vadd.f32 %v1995, %v1996
    %v1998 = vrot.slane %v1997, 2
    %v1999 = vadd.f32 %v1997, %v1998
    %v2000 = vrot.slane %v1999, 1
    %v2001 = vadd.f32 %v1999, %v2000
    %s2002 = vtos %v2001
    %v2003 = vstv %s2002
    %v2004 = vld [vmem:[%s926] sm:$0xff]
    %v2005 = vld [vmem:[%s926 + $0x8] sm:$0xff]
    %v2006 = vld [vmem:[%s926 + $0x10] sm:$0xff]
    %v2007 = vld [vmem:[%s926 + $0x18] sm:$0xff]
    %v2008 = vld [vmem:[%s926 + $0x20] sm:$0xff]
    %v2009 = vld [vmem:[%s926 + $0x28] sm:$0xff]
    %v2010 = vmul.f32 %v2004, %v1964
    %v2011 = vmul.f32 %v2005, %v1965
    %v2012 = vmul.f32 %v2006, %v1966
    %v2013 = vmul.f32 %v2007, %v1967
    %v2014 = vmul.f32 %v2008, %v1968
    %v2015 = vmul.f32 %v2009, %v1969
    %v2016 = vadd.f32 %v2010, %v2011
    %v2017 = vadd.f32 %v2016, %v2012
    %v2018 = vadd.f32 %v2017, %v2013
    %v2019 = vadd.f32 %v2018, %v2014
    %v2020 = vadd.f32 %v2019, %v2015
    %2021 = vadd.xlane.f32.xlu0 %v2020
    %v2022 = vpop.xlane.xlu0 %2021
    %v2023 = vrot.slane %v2022, 4
    %v2024 = vadd.f32 %v2022, %v2023
    %v2025 = vrot.slane %v2024, 2
    %v2026 = vadd.f32 %v2024, %v2025
    %v2027 = vrot.slane %v2026, 1
    %v2028 = vadd.f32 %v2026, %v2027
    %s2029 = vtos %v2028
    %v2030 = vstv %s2029
    %v2031 = vld [vmem:[%s954] sm:$0xff]
    %v2032 = vld [vmem:[%s954 + $0x8] sm:$0xff]
    %v2033 = vld [vmem:[%s954 + $0x10] sm:$0xff]
    %v2034 = vld [vmem:[%s954 + $0x18] sm:$0xff]
    %v2035 = vld [vmem:[%s954 + $0x20] sm:$0xff]
    %v2036 = vld [vmem:[%s954 + $0x28] sm:$0xff]
    %v2037 = vmul.f32 %v2031, %v1964
    %v2038 = vmul.f32 %v2032, %v1965
    %v2039 = vmul.f32 %v2033, %v1966
    %v2040 = vmul.f32 %v2034, %v1967
    %v2041 = vmul.f32 %v2035, %v1968
    %v2042 = vmul.f32 %v2036, %v1969
    %v2043 = vadd.f32 %v2037, %v2038
    %v2044 = vadd.f32 %v2043, %v2039
    %v2045 = vadd.f32 %v2044, %v2040
    %v2046 = vadd.f32 %v2045, %v2041
    %v2047 = vadd.f32 %v2046, %v2042
    %2048 = vadd.xlane.f32.xlu0 %v2047
    %v2049 = vpop.xlane.xlu0 %2048
    %v2050 = vrot.slane %v2049, 4
    %v2051 = vadd.f32 %v2049, %v2050
    %v2052 = vrot.slane %v2051, 2
    %v2053 = vadd.f32 %v2051, %v2052
    %v2054 = vrot.slane %v2053, 1
    %v2055 = vadd.f32 %v2053, %v2054
    %s2056 = vtos %v2055
    %v2057 = vstv %s2056
    %v2058 = vld [vmem:[%s982] sm:$0xff]
    %v2059 = vld [vmem:[%s982 + $0x8] sm:$0xff]
    %v2060 = vld [vmem:[%s982 + $0x10] sm:$0xff]
    %v2061 = vld [vmem:[%s982 + $0x18] sm:$0xff]
    %v2062 = vld [vmem:[%s982 + $0x20] sm:$0xff]
    %v2063 = vld [vmem:[%s982 + $0x28] sm:$0xff]
    %v2064 = vmul.f32 %v2058, %v1964
    %v2065 = vmul.f32 %v2059, %v1965
    %v2066 = vmul.f32 %v2060, %v1966
    %v2067 = vmul.f32 %v2061, %v1967
    %v2068 = vmul.f32 %v2062, %v1968
    %v2069 = vmul.f32 %v2063, %v1969
    %v2070 = vadd.f32 %v2064, %v2065
    %v2071 = vadd.f32 %v2070, %v2066
    %v2072 = vadd.f32 %v2071, %v2067
    %v2073 = vadd.f32 %v2072, %v2068
    %v2074 = vadd.f32 %v2073, %v2069
    %2075 = vadd.xlane.f32.xlu0 %v2074
    %v2076 = vpop.xlane.xlu0 %2075
    %v2077 = vrot.slane %v2076, 4
    %v2078 = vadd.f32 %v2076, %v2077
    %v2079 = vrot.slane %v2078, 2
    %v2080 = vadd.f32 %v2078, %v2079
    %v2081 = vrot.slane %v2080, 1
    %v2082 = vadd.f32 %v2080, %v2081
    %s2083 = vtos %v2082
    %v2084 = vstv %s2083
    %v2085 = vld [vmem:[%s1010] sm:$0xff]
    %v2086 = vld [vmem:[%s1010 + $0x8] sm:$0xff]
    %v2087 = vld [vmem:[%s1010 + $0x10] sm:$0xff]
    %v2088 = vld [vmem:[%s1010 + $0x18] sm:$0xff]
    %v2089 = vld [vmem:[%s1010 + $0x20] sm:$0xff]
    %v2090 = vld [vmem:[%s1010 + $0x28] sm:$0xff]
    %v2091 = vmul.f32 %v2085, %v1964
    %v2092 = vmul.f32 %v2086, %v1965
    %v2093 = vmul.f32 %v2087, %v1966
    %v2094 = vmul.f32 %v2088, %v1967
    %v2095 = vmul.f32 %v2089, %v1968
    %v2096 = vmul.f32 %v2090, %v1969
    %v2097 = vadd.f32 %v2091, %v2092
    %v2098 = vadd.f32 %v2097, %v2093
    %v2099 = vadd.f32 %v2098, %v2094
    %v2100 = vadd.f32 %v2099, %v2095
    %v2101 = vadd.f32 %v2100, %v2096
    %2102 = vadd.xlane.f32.xlu0 %v2101
    %v2103 = vpop.xlane.xlu0 %2102
    %v2104 = vrot.slane %v2103, 4
    %v2105 = vadd.f32 %v2103, %v2104
    %v2106 = vrot.slane %v2105, 2
    %v2107 = vadd.f32 %v2105, %v2106
    %v2108 = vrot.slane %v2107, 1
    %v2109 = vadd.f32 %v2107, %v2108
    %s2110 = vtos %v2109
    %v2111 = vstv %s2110
    %v2112 = vld [vmem:[%s1038] sm:$0xff]
    %v2113 = vld [vmem:[%s1038 + $0x8] sm:$0xff]
    %v2114 = vld [vmem:[%s1038 + $0x10] sm:$0xff]
    %v2115 = vld [vmem:[%s1038 + $0x18] sm:$0xff]
    %v2116 = vld [vmem:[%s1038 + $0x20] sm:$0xff]
    %v2117 = vld [vmem:[%s1038 + $0x28] sm:$0xff]
    %v2118 = vmul.f32 %v2112, %v1964
    %v2119 = vmul.f32 %v2113, %v1965
    %v2120 = vmul.f32 %v2114, %v1966
    %v2121 = vmul.f32 %v2115, %v1967
    %v2122 = vmul.f32 %v2116, %v1968
    %v2123 = vmul.f32 %v2117, %v1969
    %v2124 = vadd.f32 %v2118, %v2119
    %v2125 = vadd.f32 %v2124, %v2120
    %v2126 = vadd.f32 %v2125, %v2121
    %v2127 = vadd.f32 %v2126, %v2122
    %v2128 = vadd.f32 %v2127, %v2123
    %2129 = vadd.xlane.f32.xlu0 %v2128
    %v2130 = vpop.xlane.xlu0 %2129
    %v2131 = vrot.slane %v2130, 4
    %v2132 = vadd.f32 %v2130, %v2131
    %v2133 = vrot.slane %v2132, 2
    %v2134 = vadd.f32 %v2132, %v2133
    %v2135 = vrot.slane %v2134, 1
    %v2136 = vadd.f32 %v2134, %v2135
    %s2137 = vtos %v2136
    %v2138 = vstv %s2137
    %v2139 = vld [vmem:[%s1066] sm:$0xff]
    %v2140 = vld [vmem:[%s1066 + $0x8] sm:$0xff]
    %v2141 = vld [vmem:[%s1066 + $0x10] sm:$0xff]
    %v2142 = vld [vmem:[%s1066 + $0x18] sm:$0xff]
    %v2143 = vld [vmem:[%s1066 + $0x20] sm:$0xff]
    %v2144 = vld [vmem:[%s1066 + $0x28] sm:$0xff]
    %v2145 = vmul.f32 %v2139, %v1964
    %v2146 = vmul.f32 %v2140, %v1965
    %v2147 = vmul.f32 %v2141, %v1966
    %v2148 = vmul.f32 %v2142, %v1967
    %v2149 = vmul.f32 %v2143, %v1968
    %v2150 = vmul.f32 %v2144, %v1969
    %v2151 = vadd.f32 %v2145, %v2146
    %v2152 = vadd.f32 %v2151, %v2147
    %v2153 = vadd.f32 %v2152, %v2148
    %v2154 = vadd.f32 %v2153, %v2149
    %v2155 = vadd.f32 %v2154, %v2150
    %2156 = vadd.xlane.f32.xlu0 %v2155
    %v2157 = vpop.xlane.xlu0 %2156
    %v2158 = vrot.slane %v2157, 4
    %v2159 = vadd.f32 %v2157, %v2158
    %v2160 = vrot.slane %v2159, 2
    %v2161 = vadd.f32 %v2159, %v2160
    %v2162 = vrot.slane %v2161, 1
    %v2163 = vadd.f32 %v2161, %v2162
    %s2164 = vtos %v2163
    %v2165 = vstv %s2164
    %v2166 = vld [vmem:[%s1094] sm:$0xff]
    %v2167 = vld [vmem:[%s1094 + $0x8] sm:$0xff]
    %v2168 = vld [vmem:[%s1094 + $0x10] sm:$0xff]
    %v2169 = vld [vmem:[%s1094 + $0x18] sm:$0xff]
    %v2170 = vld [vmem:[%s1094 + $0x20] sm:$0xff]
    %v2171 = vld [vmem:[%s1094 + $0x28] sm:$0xff]
    %v2172 = vmul.f32 %v2166, %v1964
    %v2173 = vmul.f32 %v2167, %v1965
    %v2174 = vmul.f32 %v2168, %v1966
    %v2175 = vmul.f32 %v2169, %v1967
    %v2176 = vmul.f32 %v2170, %v1968
    %v2177 = vmul.f32 %v2171, %v1969
    %v2178 = vadd.f32 %v2172, %v2173
    %v2179 = vadd.f32 %v2178, %v2174
    %v2180 = vadd.f32 %v2179, %v2175
    %v2181 = vadd.f32 %v2180, %v2176
    %v2182 = vadd.f32 %v2181, %v2177
    %2183 = vadd.xlane.f32.xlu0 %v2182
    %v2184 = vpop.xlane.xlu0 %2183
    %v2185 = vrot.slane %v2184, 4
    %v2186 = vadd.f32 %v2184, %v2185
    %v2187 = vrot.slane %v2186, 2
    %v2188 = vadd.f32 %v2186, %v2187
    %v2189 = vrot.slane %v2188, 1
    %v2190 = vadd.f32 %v2188, %v2189
    %s2191 = vtos %v2190
    %v2192 = vstv %s2191
    %v2193 = vld [vmem:[%s1122] sm:$0xff]
    %v2194 = vld [vmem:[%s1122 + $0x8] sm:$0xff]
    %v2195 = vld [vmem:[%s1122 + $0x10] sm:$0xff]
    %v2196 = vld [vmem:[%s1122 + $0x18] sm:$0xff]
    %v2197 = vld [vmem:[%s1122 + $0x20] sm:$0xff]
    %v2198 = vld [vmem:[%s1122 + $0x28] sm:$0xff]
    %v2199 = vmul.f32 %v2193, %v1964
    %v2200 = vmul.f32 %v2194, %v1965
    %v2201 = vmul.f32 %v2195, %v1966
    %v2202 = vmul.f32 %v2196, %v1967
    %v2203 = vmul.f32 %v2197, %v1968
    %v2204 = vmul.f32 %v2198, %v1969
    %v2205 = vadd.f32 %v2199, %v2200
    %v2206 = vadd.f32 %v2205, %v2201
    %v2207 = vadd.f32 %v2206, %v2202
    %v2208 = vadd.f32 %v2207, %v2203
    %v2209 = vadd.f32 %v2208, %v2204
    %2210 = vadd.xlane.f32.xlu0 %v2209
    %v2211 = vpop.xlane.xlu0 %2210
    %v2212 = vrot.slane %v2211, 4
    %v2213 = vadd.f32 %v2211, %v2212
    %v2214 = vrot.slane %v2213, 2
    %v2215 = vadd.f32 %v2213, %v2214
    %v2216 = vrot.slane %v2215, 1
    %v2217 = vadd.f32 %v2215, %v2216
    %s2218 = vtos %v2217
    %v2219 = vstv %s2218
    %v2220 = vld [vmem:[%s1150] sm:$0xff]
    %v2221 = vld [vmem:[%s1150 + $0x8] sm:$0xff]
    %v2222 = vld [vmem:[%s1150 + $0x10] sm:$0xff]
    %v2223 = vld [vmem:[%s1150 + $0x18] sm:$0xff]
    %v2224 = vld [vmem:[%s1150 + $0x20] sm:$0xff]
    %v2225 = vld [vmem:[%s1150 + $0x28] sm:$0xff]
    %v2226 = vmul.f32 %v2220, %v1964
    %v2227 = vmul.f32 %v2221, %v1965
    %v2228 = vmul.f32 %v2222, %v1966
    %v2229 = vmul.f32 %v2223, %v1967
    %v2230 = vmul.f32 %v2224, %v1968
    %v2231 = vmul.f32 %v2225, %v1969
    %v2232 = vadd.f32 %v2226, %v2227
    %v2233 = vadd.f32 %v2232, %v2228
    %v2234 = vadd.f32 %v2233, %v2229
    %v2235 = vadd.f32 %v2234, %v2230
    %v2236 = vadd.f32 %v2235, %v2231
    %2237 = vadd.xlane.f32.xlu0 %v2236
    %v2238 = vpop.xlane.xlu0 %2237
    %v2239 = vrot.slane %v2238, 4
    %v2240 = vadd.f32 %v2238, %v2239
    %v2241 = vrot.slane %v2240, 2
    %v2242 = vadd.f32 %v2240, %v2241
    %v2243 = vrot.slane %v2242, 1
    %v2244 = vadd.f32 %v2242, %v2243
    %s2245 = vtos %v2244
    %v2246 = vstv %s2245
    %v2247 = vsel %vm1178, %v2003, %v2030
    %v2248 = vsel %vm1180, %v2247, %v2057
    %v2249 = vsel %vm1182, %v2248, %v2084
    %v2250 = vsel %vm1184, %v2249, %v2111
    %v2251 = vsel %vm1186, %v2250, %v2138
    %v2252 = vsel %vm1188, %v2251, %v2165
    %v2253 = vsel %vm1190, %v2252, %v2192
    %v2254 = vsel %vm1192, %v2253, %v2219
    %v2255 = vsel %vm1194, %v2254, %v2246
    %v2256 = vadd.f32 %v2255, %v71
    %s2257 = scalar_lea.vmem [#allocation11], 1
    %2258 = vst.msk [vmem:[%s2257] sm:$0x1] %vm1197, %v2256
    // Predicated region
    $region42: #{tpu_custom_call.1} parent=1 // pred_check
      _
    $region43: #{tpu_custom_call.1} parent=1 // pred_check_branch
      %2260 = sbr.rel (0) target = $region45
    $region44: #{tpu_custom_call.1} parent=1 // pred_region
      %s2262 = ssub.s32 768, 768
      %2263 = vsyncadd [#allocation5], %s2262
      %s2264 = sshll.u32 [#allocation8], 4
      %s2265 = int_to_ptr.vmem [resolvable:$true] %s2264
      %2270 = dma.vmem_to_hbm [thread:$0]  %s2265, 768, %s8, [#allocation5], 384, 384, 24
    $region45: #{tpu_custom_call.1} parent=1 // pred_fallthru
      _
    // Predicated region
    $region46: #{tpu_custom_call.1} parent=1 // pred_check
      _
    $region47: #{tpu_custom_call.1} parent=1 // pred_check_branch
      %2272 = sbr.rel (0) target = $region49
    $region48: #{tpu_custom_call.1} parent=1 // pred_region
      %s2274 = ssub.s32 1536, 1536
      %2275 = vsyncadd [#allocation10], %s2274
      %s2276 = sshll.u32 [#allocation9], 4
      %s2277 = int_to_ptr.vmem [resolvable:$true] %s2276
      %2282 = dma.vmem_to_hbm [thread:$0]  %s2277, 1536, %s9, [#allocation10], 384, 384, 24
    $region49: #{tpu_custom_call.1} parent=1 // pred_fallthru
      _
    // Predicated region
    $region50: #{tpu_custom_call.1} parent=1 // pred_check
      _
    $region51: #{tpu_custom_call.1} parent=1 // pred_check_branch
      %2284 = sbr.rel (0) target = $region53
    $region52: #{tpu_custom_call.1} parent=1 // pred_region
      %s2286 = ssub.s32 32, 32
      %2287 = vsyncadd [#allocation10], %s2286
      %s2288 = sshll.u32 [#allocation11], 4
      %s2289 = int_to_ptr.vmem [resolvable:$true] %s2288
      %2294 = dma.vmem_to_hbm [thread:$0]  %s2289, 32, %s10, [#allocation10], 16, 16, 1
    $region53: #{tpu_custom_call.1} parent=1 // pred_fallthru
      _
    // Predicated region
    $region54: #{tpu_custom_call.1} parent=1 // pred_check
      _
    $region55: #{tpu_custom_call.1} parent=1 // pred_check_branch
      %2296 = sbr.rel (0) target = $region57
    $region56: #{tpu_custom_call.1} parent=1 // pred_region
      %2297 = dma.done [#allocation5], 768
    $region57: #{tpu_custom_call.1} parent=1 // pred_fallthru
      _
    // Predicated region
    $region58: #{tpu_custom_call.1} parent=1 // pred_check
      _
    $region59: #{tpu_custom_call.1} parent=1 // pred_check_branch
      %2299 = sbr.rel (0) target = $region61
    $region60: #{tpu_custom_call.1} parent=1 // pred_region
      %2300 = dma.done [#allocation10], 1536
    $region61: #{tpu_custom_call.1} parent=1 // pred_fallthru
      _
    // Predicated region
    $region62: #{tpu_custom_call.1} parent=1 // pred_check
      _
    $region63: #{tpu_custom_call.1} parent=1 // pred_check_branch
      %2302 = sbr.rel (0) target = $region65
    $region64: #{tpu_custom_call.1} parent=1 // pred_region
      %2303 = dma.done [#allocation10], 32
    $region65: #{tpu_custom_call.1} parent=1 // pred_fallthru
      _
    %2304 = vsyncpa [#allocation4], 1
    %2305 = vsyncpa [#allocation7], 1
    %2306 = vsyncpa [#allocation5], 1
    %2307 = vsyncpa [#allocation10], 1

</llo_original>
